<compile_context>
chip_gen: v7x
topology: tpu7x:2x2x1
jax: 0.10.0
libtpu: 0.0.40
codegen_flags: <defaults>
</compile_context>

<pallas_src>
import jax
import jax.numpy as jnp
from jax import lax
from jax.experimental import pallas as pl
from jax.experimental.pallas import tpu as pltpu


def lstm_classifier_kernel(content_ref, tagw_ref, tagb_ref,        # SMEM inputs
                           embed_hbm, w_ih_ref, w_hh_ref, b_ref,   # HBM / VMEM inputs
                           out_ref,                                # VMEM output (1, 128)
                           xbuf_ref, sem):                         # scratch: VMEM (T,D), DMA sems (T,)
    T = content_ref.shape[0]
    H = w_hh_ref.shape[0]

    # --- 1) Gather: DMA only the T needed embedding rows HBM -> VMEM. --------
    # Token ids live in SMEM (scalar-addressed DMA descriptors); all T row
    # copies are issued up front so they overlap each other and the weight loads.
    copies = []
    for t in range(T):
        tok = content_ref[t]                                  # SMEM scalar token id
        cp = pltpu.make_async_copy(embed_hbm.at[pl.ds(tok, 1), :],
                                   xbuf_ref.at[pl.ds(t, 1), :],
                                   sem.at[t])
        cp.start()
        copies.append(cp)
    for cp in copies:
        cp.wait()

    # --- 2) Input projection for the T gathered rows only. -------------------
    # (T, D) @ (D, 4H) + (b_ih + b_hh) -> (T, 4H); one small MXU matmul.
    xw = (jnp.dot(xbuf_ref[...], w_ih_ref[...],
                  preferred_element_type=jnp.float32)
          + b_ref[...])

    w_hh = w_hh_ref[...]                                      # loop-invariant RHS, hoisted

    # Lane constants for single-tanh gate evaluation:
    #   sigmoid(x) = 0.5 * tanh(x / 2) + 0.5     (i, f, o lanes)
    #   tanh(x)    = 1.0 * tanh(x)     + 0.0     (g lanes)
    lane = lax.broadcasted_iota(jnp.int32, (1, 4 * H), 1)
    is_g = (lane >= 2 * H) & (lane < 3 * H)
    pre = jnp.where(is_g, 1.0, 0.5).astype(jnp.float32)       # pre-scale == post-mult
    add = jnp.where(is_g, 0.0, 0.5).astype(jnp.float32)       # post-add

    h = jnp.zeros((1, H), jnp.float32)                        # init_hidden() -> zeros
    c = jnp.zeros((1, H), jnp.float32)
    acc_vec = jnp.zeros((1, H), jnp.float32)                  # tag-weighted sum of h_t

    # --- 3) Recurrence: T is small and static -> fully unroll. ----------------
    for t in range(T):
        gates = xw[t:t + 1, :] + jnp.dot(h, w_hh,
                                         preferred_element_type=jnp.float32)
        act = jnp.tanh(gates * pre) * pre + add               # one EUP push for all gates
        i_g = act[:, 0:H]
        f_g = act[:, H:2 * H]
        g_g = act[:, 2 * H:3 * H]
        o_g = act[:, 3 * H:4 * H]

        c = f_g * c + i_g * g_g
        h = o_g * jnp.tanh(c)

        # Fused AvgPool1d(d_hidden) + Linear(T, 1): accumulate tag_w[t] * h_t
        # off the h/c dependency chain; reduce once after the loop.
        acc_vec = acc_vec + tagw_ref[t] * h

    result = jnp.sum(acc_vec) * (1.0 / H) + tagb_ref[0]
    # Lane-dense output row; wrapper reads element [0, 0].
    out_ref[...] = jnp.full(out_ref.shape, result, dtype=jnp.float32)


def my_classifier_forward(content, params):
    """content: (T,) int32 token ids. Returns shape (1,) float32 (matches PyTorch)."""
    embed = params["embed"]                # (n_embed, d_embed)  -- stays in HBM
    w_ih = params["w_ih"]                  # (d_embed, 4H)
    w_hh = params["w_hh"]                  # (H, 4H)
    b = params["b"]                        # (1, 4H)  = b_ih + b_hh
    tag_w = params["tag_w"]                # (T,)
    tag_b = params["tag_b"]                # (1,)

    T = content.shape[0]
    d_embed = embed.shape[1]

    out = pl.pallas_call(
        lstm_classifier_kernel,
        out_shape=jax.ShapeDtypeStruct((1, 128), jnp.float32),
        in_specs=[
            pl.BlockSpec(memory_space=pltpu.MemorySpace.SMEM),   # content (token ids)
            pl.BlockSpec(memory_space=pltpu.MemorySpace.SMEM),   # tag_w
            pl.BlockSpec(memory_space=pltpu.MemorySpace.SMEM),   # tag_b
            pl.BlockSpec(memory_space=pl.ANY),                   # embed table: raw HBM ref
            pl.BlockSpec(memory_space=pltpu.MemorySpace.VMEM),   # w_ih
            pl.BlockSpec(memory_space=pltpu.MemorySpace.VMEM),   # w_hh
            pl.BlockSpec(memory_space=pltpu.MemorySpace.VMEM),   # b
        ],
        out_specs=pl.BlockSpec(memory_space=pltpu.MemorySpace.VMEM),
        scratch_shapes=[pltpu.VMEM((T, d_embed), jnp.float32),   # gathered embed rows
                        pltpu.SemaphoreType.DMA((T,))],          # one sem per row DMA
    )(content.astype(jnp.int32), tag_w, tag_b, embed, w_ih, w_hh, b)
    return out[0, 0:1]                     # (1,)


def reference_forward(content, params):
    """Pure-JAX reference mirroring the PyTorch forward."""
    embeds = jnp.take(params["embed"], content, axis=0).astype(jnp.float32)
    T = embeds.shape[0]
    H = params["w_hh"].shape[0]
    h = jnp.zeros((1, H), jnp.float32)
    c = jnp.zeros((1, H), jnp.float32)
    avgs = []
    for t in range(T):
        x_t = embeds[t:t + 1, :]
        gates = x_t @ params["w_ih"] + h @ params["w_hh"] + params["b"]
        i_g = jax.nn.sigmoid(gates[:, 0:H])
        f_g = jax.nn.sigmoid(gates[:, H:2 * H])
        g_g = jnp.tanh(gates[:, 2 * H:3 * H])
        o_g = jax.nn.sigmoid(gates[:, 3 * H:4 * H])
        c = f_g * c + i_g * g_g
        h = o_g * jnp.tanh(c)
        avgs.append(jnp.mean(h))                       # AvgPool1d(d_hidden)
    avgs = jnp.stack(avgs)                             # (T,)
    return (avgs @ params["tag_w"] + params["tag_b"][0]).reshape((1,))


def init_params(key, n_embed, d_embed, d_hidden, seq_len):
    ks = jax.random.split(key, 8)
    bound = 1.0 / jnp.sqrt(d_hidden)
    embed = jax.random.normal(ks[0], (n_embed, d_embed), jnp.float32)
    # PyTorch LSTM stores weight_ih as (4H, d_embed); we keep the transposed layout.
    w_ih = jax.random.uniform(ks[1], (d_embed, 4 * d_hidden), jnp.float32, -bound, bound)
    w_hh = jax.random.uniform(ks[2], (d_hidden, 4 * d_hidden), jnp.float32, -bound, bound)
    b_ih = jax.random.uniform(ks[3], (4 * d_hidden,), jnp.float32, -bound, bound)
    b_hh = jax.random.uniform(ks[4], (4 * d_hidden,), jnp.float32, -bound, bound)
    b = (b_ih + b_hh).reshape(1, 4 * d_hidden)
    # tag2tag = nn.Linear(T, 1) is created (randomly) inside forward in the PyTorch
    # code; here it is initialized deterministically once.
    lin_bound = 1.0 / jnp.sqrt(seq_len)
    tag_w = jax.random.uniform(ks[5], (seq_len,), jnp.float32, -lin_bound, lin_bound)
    tag_b = jax.random.uniform(ks[6], (1,), jnp.float32, -lin_bound, lin_bound)
    return {"embed": embed, "w_ih": w_ih, "w_hh": w_hh, "b": b,
            "tag_w": tag_w, "tag_b": tag_b}


if __name__ == "__main__":
    # Small config: n_embed=32 vocab, d_embed=16, d_hidden=32, seq_len=8, batch=1.
    n_embed, d_embed, d_hidden, seq_len = 32, 16, 32, 8

    key = jax.random.PRNGKey(0)
    k_params, k_content = jax.random.split(key)
    params = init_params(k_params, n_embed, d_embed, d_hidden, seq_len)
    content = jax.random.randint(k_content, (seq_len,), 0, n_embed, dtype=jnp.int32)

    out = my_classifier_forward(content, params)
    out = jax.block_until_ready(out)

    ref = reference_forward(content, params)
    assert out.shape == (1,)
    assert jnp.allclose(out, ref, atol=1e-4, rtol=1e-4), (out, ref)

    print("KERNEL_OK")
</pallas_src>

<mosaic_0001>
module attributes {stable_mosaic.version = 11 : i64} {
  func.func @lstm_classifier_kernel(%arg0: memref<8xi32, #tpu.memory_space<smem>>, %arg1: memref<8xf32, #tpu.memory_space<smem>>, %arg2: memref<1xf32, #tpu.memory_space<smem>>, %arg3: memref<32x16xf32, #tpu.memory_space<any>>, %arg4: memref<16x128xf32, #tpu.memory_space<vmem>>, %arg5: memref<32x128xf32, #tpu.memory_space<vmem>>, %arg6: memref<1x128xf32, #tpu.memory_space<vmem>>, %arg7: memref<1x128xf32, #tpu.memory_space<vmem>>, %arg8: memref<8x16xf32, #tpu.memory_space<vmem>>, %arg9: memref<8x!tpu.dma_semaphore, #tpu.memory_space<semaphore_mem>>) attributes {dimension_semantics = [], scalar_prefetch = 0 : i64, scratch_operands = 2 : i64, tpu.core_type = #tpu.core_type<tc>} {
    %c0 = arith.constant 0 : index
    %0 = memref.load %arg0[%c0] : memref<8xi32, #tpu.memory_space<smem>>
    %c0_i32 = arith.constant 0 : i32
    %c0_i32_0 = arith.constant 0 : i32
    %1 = tpu.memref_slice %arg3[%0, %c0_i32_0] : memref<32x16xf32, #tpu.memory_space<any>> -> memref<1x16xf32, #tpu.memory_space<any>>
    %c0_i32_1 = arith.constant 0 : i32
    %c0_i32_2 = arith.constant 0 : i32
    %2 = tpu.memref_slice %arg8[%c0_i32_1, %c0_i32_2] : memref<8x16xf32, #tpu.memory_space<vmem>> -> memref<1x16xf32, #tpu.memory_space<vmem>>
    %3 = tpu.memref_slice %arg9[%c0_i32] : memref<8x!tpu.dma_semaphore, #tpu.memory_space<semaphore_mem>> -> memref<1x!tpu.dma_semaphore, #tpu.memory_space<semaphore_mem>>
    %4 = tpu.memref_squeeze %3 : memref<1x!tpu.dma_semaphore, #tpu.memory_space<semaphore_mem>> -> memref<!tpu.dma_semaphore, #tpu.memory_space<semaphore_mem>>
    tpu.enqueue_dma source(%1 : memref<1x16xf32, #tpu.memory_space<any>>) target(%2 : memref<1x16xf32, #tpu.memory_space<vmem>>) target_semaphore(%4 : memref<!tpu.dma_semaphore, #tpu.memory_space<semaphore_mem>>)
    %c1 = arith.constant 1 : index
    %5 = memref.load %arg0[%c1] : memref<8xi32, #tpu.memory_space<smem>>
    %c1_i32 = arith.constant 1 : i32
    %c0_i32_3 = arith.constant 0 : i32
    %6 = tpu.memref_slice %arg3[%5, %c0_i32_3] : memref<32x16xf32, #tpu.memory_space<any>> -> memref<1x16xf32, #tpu.memory_space<any>>
    %c1_i32_4 = arith.constant 1 : i32
    %c0_i32_5 = arith.constant 0 : i32
    %7 = tpu.memref_slice %arg8[%c1_i32_4, %c0_i32_5] : memref<8x16xf32, #tpu.memory_space<vmem>> -> memref<1x16xf32, #tpu.memory_space<vmem>>
    %8 = tpu.memref_slice %arg9[%c1_i32] : memref<8x!tpu.dma_semaphore, #tpu.memory_space<semaphore_mem>> -> memref<1x!tpu.dma_semaphore, #tpu.memory_space<semaphore_mem>>
    %9 = tpu.memref_squeeze %8 : memref<1x!tpu.dma_semaphore, #tpu.memory_space<semaphore_mem>> -> memref<!tpu.dma_semaphore, #tpu.memory_space<semaphore_mem>>
    tpu.enqueue_dma source(%6 : memref<1x16xf32, #tpu.memory_space<any>>) target(%7 : memref<1x16xf32, #tpu.memory_space<vmem>>) target_semaphore(%9 : memref<!tpu.dma_semaphore, #tpu.memory_space<semaphore_mem>>)
    %c2 = arith.constant 2 : index
    %10 = memref.load %arg0[%c2] : memref<8xi32, #tpu.memory_space<smem>>
    %c2_i32 = arith.constant 2 : i32
    %c0_i32_6 = arith.constant 0 : i32
    %11 = tpu.memref_slice %arg3[%10, %c0_i32_6] : memref<32x16xf32, #tpu.memory_space<any>> -> memref<1x16xf32, #tpu.memory_space<any>>
    %c2_i32_7 = arith.constant 2 : i32
    %c0_i32_8 = arith.constant 0 : i32
    %12 = tpu.memref_slice %arg8[%c2_i32_7, %c0_i32_8] : memref<8x16xf32, #tpu.memory_space<vmem>> -> memref<1x16xf32, #tpu.memory_space<vmem>>
    %13 = tpu.memref_slice %arg9[%c2_i32] : memref<8x!tpu.dma_semaphore, #tpu.memory_space<semaphore_mem>> -> memref<1x!tpu.dma_semaphore, #tpu.memory_space<semaphore_mem>>
    %14 = tpu.memref_squeeze %13 : memref<1x!tpu.dma_semaphore, #tpu.memory_space<semaphore_mem>> -> memref<!tpu.dma_semaphore, #tpu.memory_space<semaphore_mem>>
    tpu.enqueue_dma source(%11 : memref<1x16xf32, #tpu.memory_space<any>>) target(%12 : memref<1x16xf32, #tpu.memory_space<vmem>>) target_semaphore(%14 : memref<!tpu.dma_semaphore, #tpu.memory_space<semaphore_mem>>)
    %c3 = arith.constant 3 : index
    %15 = memref.load %arg0[%c3] : memref<8xi32, #tpu.memory_space<smem>>
    %c3_i32 = arith.constant 3 : i32
    %c0_i32_9 = arith.constant 0 : i32
    %16 = tpu.memref_slice %arg3[%15, %c0_i32_9] : memref<32x16xf32, #tpu.memory_space<any>> -> memref<1x16xf32, #tpu.memory_space<any>>
    %c3_i32_10 = arith.constant 3 : i32
    %c0_i32_11 = arith.constant 0 : i32
    %17 = tpu.memref_slice %arg8[%c3_i32_10, %c0_i32_11] : memref<8x16xf32, #tpu.memory_space<vmem>> -> memref<1x16xf32, #tpu.memory_space<vmem>>
    %18 = tpu.memref_slice %arg9[%c3_i32] : memref<8x!tpu.dma_semaphore, #tpu.memory_space<semaphore_mem>> -> memref<1x!tpu.dma_semaphore, #tpu.memory_space<semaphore_mem>>
    %19 = tpu.memref_squeeze %18 : memref<1x!tpu.dma_semaphore, #tpu.memory_space<semaphore_mem>> -> memref<!tpu.dma_semaphore, #tpu.memory_space<semaphore_mem>>
    tpu.enqueue_dma source(%16 : memref<1x16xf32, #tpu.memory_space<any>>) target(%17 : memref<1x16xf32, #tpu.memory_space<vmem>>) target_semaphore(%19 : memref<!tpu.dma_semaphore, #tpu.memory_space<semaphore_mem>>)
    %c4 = arith.constant 4 : index
    %20 = memref.load %arg0[%c4] : memref<8xi32, #tpu.memory_space<smem>>
    %c4_i32 = arith.constant 4 : i32
    %c0_i32_12 = arith.constant 0 : i32
    %21 = tpu.memref_slice %arg3[%20, %c0_i32_12] : memref<32x16xf32, #tpu.memory_space<any>> -> memref<1x16xf32, #tpu.memory_space<any>>
    %c4_i32_13 = arith.constant 4 : i32
    %c0_i32_14 = arith.constant 0 : i32
    %22 = tpu.memref_slice %arg8[%c4_i32_13, %c0_i32_14] : memref<8x16xf32, #tpu.memory_space<vmem>> -> memref<1x16xf32, #tpu.memory_space<vmem>>
    %23 = tpu.memref_slice %arg9[%c4_i32] : memref<8x!tpu.dma_semaphore, #tpu.memory_space<semaphore_mem>> -> memref<1x!tpu.dma_semaphore, #tpu.memory_space<semaphore_mem>>
    %24 = tpu.memref_squeeze %23 : memref<1x!tpu.dma_semaphore, #tpu.memory_space<semaphore_mem>> -> memref<!tpu.dma_semaphore, #tpu.memory_space<semaphore_mem>>
    tpu.enqueue_dma source(%21 : memref<1x16xf32, #tpu.memory_space<any>>) target(%22 : memref<1x16xf32, #tpu.memory_space<vmem>>) target_semaphore(%24 : memref<!tpu.dma_semaphore, #tpu.memory_space<semaphore_mem>>)
    %c5 = arith.constant 5 : index
    %25 = memref.load %arg0[%c5] : memref<8xi32, #tpu.memory_space<smem>>
    %c5_i32 = arith.constant 5 : i32
    %c0_i32_15 = arith.constant 0 : i32
    %26 = tpu.memref_slice %arg3[%25, %c0_i32_15] : memref<32x16xf32, #tpu.memory_space<any>> -> memref<1x16xf32, #tpu.memory_space<any>>
    %c5_i32_16 = arith.constant 5 : i32
    %c0_i32_17 = arith.constant 0 : i32
    %27 = tpu.memref_slice %arg8[%c5_i32_16, %c0_i32_17] : memref<8x16xf32, #tpu.memory_space<vmem>> -> memref<1x16xf32, #tpu.memory_space<vmem>>
    %28 = tpu.memref_slice %arg9[%c5_i32] : memref<8x!tpu.dma_semaphore, #tpu.memory_space<semaphore_mem>> -> memref<1x!tpu.dma_semaphore, #tpu.memory_space<semaphore_mem>>
    %29 = tpu.memref_squeeze %28 : memref<1x!tpu.dma_semaphore, #tpu.memory_space<semaphore_mem>> -> memref<!tpu.dma_semaphore, #tpu.memory_space<semaphore_mem>>
    tpu.enqueue_dma source(%26 : memref<1x16xf32, #tpu.memory_space<any>>) target(%27 : memref<1x16xf32, #tpu.memory_space<vmem>>) target_semaphore(%29 : memref<!tpu.dma_semaphore, #tpu.memory_space<semaphore_mem>>)
    %c6 = arith.constant 6 : index
    %30 = memref.load %arg0[%c6] : memref<8xi32, #tpu.memory_space<smem>>
    %c6_i32 = arith.constant 6 : i32
    %c0_i32_18 = arith.constant 0 : i32
    %31 = tpu.memref_slice %arg3[%30, %c0_i32_18] : memref<32x16xf32, #tpu.memory_space<any>> -> memref<1x16xf32, #tpu.memory_space<any>>
    %c6_i32_19 = arith.constant 6 : i32
    %c0_i32_20 = arith.constant 0 : i32
    %32 = tpu.memref_slice %arg8[%c6_i32_19, %c0_i32_20] : memref<8x16xf32, #tpu.memory_space<vmem>> -> memref<1x16xf32, #tpu.memory_space<vmem>>
    %33 = tpu.memref_slice %arg9[%c6_i32] : memref<8x!tpu.dma_semaphore, #tpu.memory_space<semaphore_mem>> -> memref<1x!tpu.dma_semaphore, #tpu.memory_space<semaphore_mem>>
    %34 = tpu.memref_squeeze %33 : memref<1x!tpu.dma_semaphore, #tpu.memory_space<semaphore_mem>> -> memref<!tpu.dma_semaphore, #tpu.memory_space<semaphore_mem>>
    tpu.enqueue_dma source(%31 : memref<1x16xf32, #tpu.memory_space<any>>) target(%32 : memref<1x16xf32, #tpu.memory_space<vmem>>) target_semaphore(%34 : memref<!tpu.dma_semaphore, #tpu.memory_space<semaphore_mem>>)
    %c7 = arith.constant 7 : index
    %35 = memref.load %arg0[%c7] : memref<8xi32, #tpu.memory_space<smem>>
    %c7_i32 = arith.constant 7 : i32
    %c0_i32_21 = arith.constant 0 : i32
    %36 = tpu.memref_slice %arg3[%35, %c0_i32_21] : memref<32x16xf32, #tpu.memory_space<any>> -> memref<1x16xf32, #tpu.memory_space<any>>
    %c7_i32_22 = arith.constant 7 : i32
    %c0_i32_23 = arith.constant 0 : i32
    %37 = tpu.memref_slice %arg8[%c7_i32_22, %c0_i32_23] : memref<8x16xf32, #tpu.memory_space<vmem>> -> memref<1x16xf32, #tpu.memory_space<vmem>>
    %38 = tpu.memref_slice %arg9[%c7_i32] : memref<8x!tpu.dma_semaphore, #tpu.memory_space<semaphore_mem>> -> memref<1x!tpu.dma_semaphore, #tpu.memory_space<semaphore_mem>>
    %39 = tpu.memref_squeeze %38 : memref<1x!tpu.dma_semaphore, #tpu.memory_space<semaphore_mem>> -> memref<!tpu.dma_semaphore, #tpu.memory_space<semaphore_mem>>
    tpu.enqueue_dma source(%36 : memref<1x16xf32, #tpu.memory_space<any>>) target(%37 : memref<1x16xf32, #tpu.memory_space<vmem>>) target_semaphore(%39 : memref<!tpu.dma_semaphore, #tpu.memory_space<semaphore_mem>>)
    %c0_i32_24 = arith.constant 0 : i32
    %c0_i32_25 = arith.constant 0 : i32
    %40 = tpu.memref_slice %arg3[%0, %c0_i32_25] : memref<32x16xf32, #tpu.memory_space<any>> -> memref<1x16xf32, #tpu.memory_space<any>>
    %c0_i32_26 = arith.constant 0 : i32
    %c0_i32_27 = arith.constant 0 : i32
    %41 = tpu.memref_slice %arg8[%c0_i32_26, %c0_i32_27] : memref<8x16xf32, #tpu.memory_space<vmem>> -> memref<1x16xf32, #tpu.memory_space<vmem>>
    %42 = tpu.memref_slice %arg9[%c0_i32_24] : memref<8x!tpu.dma_semaphore, #tpu.memory_space<semaphore_mem>> -> memref<1x!tpu.dma_semaphore, #tpu.memory_space<semaphore_mem>>
    %43 = tpu.memref_squeeze %42 : memref<1x!tpu.dma_semaphore, #tpu.memory_space<semaphore_mem>> -> memref<!tpu.dma_semaphore, #tpu.memory_space<semaphore_mem>>
    tpu.wait_dma2 semaphore(%43 : memref<!tpu.dma_semaphore, #tpu.memory_space<semaphore_mem>>) src(%40 : memref<1x16xf32, #tpu.memory_space<any>>) dst(%41 : memref<1x16xf32, #tpu.memory_space<vmem>>)
    %c1_i32_28 = arith.constant 1 : i32
    %c0_i32_29 = arith.constant 0 : i32
    %44 = tpu.memref_slice %arg3[%5, %c0_i32_29] : memref<32x16xf32, #tpu.memory_space<any>> -> memref<1x16xf32, #tpu.memory_space<any>>
    %c1_i32_30 = arith.constant 1 : i32
    %c0_i32_31 = arith.constant 0 : i32
    %45 = tpu.memref_slice %arg8[%c1_i32_30, %c0_i32_31] : memref<8x16xf32, #tpu.memory_space<vmem>> -> memref<1x16xf32, #tpu.memory_space<vmem>>
    %46 = tpu.memref_slice %arg9[%c1_i32_28] : memref<8x!tpu.dma_semaphore, #tpu.memory_space<semaphore_mem>> -> memref<1x!tpu.dma_semaphore, #tpu.memory_space<semaphore_mem>>
    %47 = tpu.memref_squeeze %46 : memref<1x!tpu.dma_semaphore, #tpu.memory_space<semaphore_mem>> -> memref<!tpu.dma_semaphore, #tpu.memory_space<semaphore_mem>>
    tpu.wait_dma2 semaphore(%47 : memref<!tpu.dma_semaphore, #tpu.memory_space<semaphore_mem>>) src(%44 : memref<1x16xf32, #tpu.memory_space<any>>) dst(%45 : memref<1x16xf32, #tpu.memory_space<vmem>>)
    %c2_i32_32 = arith.constant 2 : i32
    %c0_i32_33 = arith.constant 0 : i32
    %48 = tpu.memref_slice %arg3[%10, %c0_i32_33] : memref<32x16xf32, #tpu.memory_space<any>> -> memref<1x16xf32, #tpu.memory_space<any>>
    %c2_i32_34 = arith.constant 2 : i32
    %c0_i32_35 = arith.constant 0 : i32
    %49 = tpu.memref_slice %arg8[%c2_i32_34, %c0_i32_35] : memref<8x16xf32, #tpu.memory_space<vmem>> -> memref<1x16xf32, #tpu.memory_space<vmem>>
    %50 = tpu.memref_slice %arg9[%c2_i32_32] : memref<8x!tpu.dma_semaphore, #tpu.memory_space<semaphore_mem>> -> memref<1x!tpu.dma_semaphore, #tpu.memory_space<semaphore_mem>>
    %51 = tpu.memref_squeeze %50 : memref<1x!tpu.dma_semaphore, #tpu.memory_space<semaphore_mem>> -> memref<!tpu.dma_semaphore, #tpu.memory_space<semaphore_mem>>
    tpu.wait_dma2 semaphore(%51 : memref<!tpu.dma_semaphore, #tpu.memory_space<semaphore_mem>>) src(%48 : memref<1x16xf32, #tpu.memory_space<any>>) dst(%49 : memref<1x16xf32, #tpu.memory_space<vmem>>)
    %c3_i32_36 = arith.constant 3 : i32
    %c0_i32_37 = arith.constant 0 : i32
    %52 = tpu.memref_slice %arg3[%15, %c0_i32_37] : memref<32x16xf32, #tpu.memory_space<any>> -> memref<1x16xf32, #tpu.memory_space<any>>
    %c3_i32_38 = arith.constant 3 : i32
    %c0_i32_39 = arith.constant 0 : i32
    %53 = tpu.memref_slice %arg8[%c3_i32_38, %c0_i32_39] : memref<8x16xf32, #tpu.memory_space<vmem>> -> memref<1x16xf32, #tpu.memory_space<vmem>>
    %54 = tpu.memref_slice %arg9[%c3_i32_36] : memref<8x!tpu.dma_semaphore, #tpu.memory_space<semaphore_mem>> -> memref<1x!tpu.dma_semaphore, #tpu.memory_space<semaphore_mem>>
    %55 = tpu.memref_squeeze %54 : memref<1x!tpu.dma_semaphore, #tpu.memory_space<semaphore_mem>> -> memref<!tpu.dma_semaphore, #tpu.memory_space<semaphore_mem>>
    tpu.wait_dma2 semaphore(%55 : memref<!tpu.dma_semaphore, #tpu.memory_space<semaphore_mem>>) src(%52 : memref<1x16xf32, #tpu.memory_space<any>>) dst(%53 : memref<1x16xf32, #tpu.memory_space<vmem>>)
    %c4_i32_40 = arith.constant 4 : i32
    %c0_i32_41 = arith.constant 0 : i32
    %56 = tpu.memref_slice %arg3[%20, %c0_i32_41] : memref<32x16xf32, #tpu.memory_space<any>> -> memref<1x16xf32, #tpu.memory_space<any>>
    %c4_i32_42 = arith.constant 4 : i32
    %c0_i32_43 = arith.constant 0 : i32
    %57 = tpu.memref_slice %arg8[%c4_i32_42, %c0_i32_43] : memref<8x16xf32, #tpu.memory_space<vmem>> -> memref<1x16xf32, #tpu.memory_space<vmem>>
    %58 = tpu.memref_slice %arg9[%c4_i32_40] : memref<8x!tpu.dma_semaphore, #tpu.memory_space<semaphore_mem>> -> memref<1x!tpu.dma_semaphore, #tpu.memory_space<semaphore_mem>>
    %59 = tpu.memref_squeeze %58 : memref<1x!tpu.dma_semaphore, #tpu.memory_space<semaphore_mem>> -> memref<!tpu.dma_semaphore, #tpu.memory_space<semaphore_mem>>
    tpu.wait_dma2 semaphore(%59 : memref<!tpu.dma_semaphore, #tpu.memory_space<semaphore_mem>>) src(%56 : memref<1x16xf32, #tpu.memory_space<any>>) dst(%57 : memref<1x16xf32, #tpu.memory_space<vmem>>)
    %c5_i32_44 = arith.constant 5 : i32
    %c0_i32_45 = arith.constant 0 : i32
    %60 = tpu.memref_slice %arg3[%25, %c0_i32_45] : memref<32x16xf32, #tpu.memory_space<any>> -> memref<1x16xf32, #tpu.memory_space<any>>
    %c5_i32_46 = arith.constant 5 : i32
    %c0_i32_47 = arith.constant 0 : i32
    %61 = tpu.memref_slice %arg8[%c5_i32_46, %c0_i32_47] : memref<8x16xf32, #tpu.memory_space<vmem>> -> memref<1x16xf32, #tpu.memory_space<vmem>>
    %62 = tpu.memref_slice %arg9[%c5_i32_44] : memref<8x!tpu.dma_semaphore, #tpu.memory_space<semaphore_mem>> -> memref<1x!tpu.dma_semaphore, #tpu.memory_space<semaphore_mem>>
    %63 = tpu.memref_squeeze %62 : memref<1x!tpu.dma_semaphore, #tpu.memory_space<semaphore_mem>> -> memref<!tpu.dma_semaphore, #tpu.memory_space<semaphore_mem>>
    tpu.wait_dma2 semaphore(%63 : memref<!tpu.dma_semaphore, #tpu.memory_space<semaphore_mem>>) src(%60 : memref<1x16xf32, #tpu.memory_space<any>>) dst(%61 : memref<1x16xf32, #tpu.memory_space<vmem>>)
    %c6_i32_48 = arith.constant 6 : i32
    %c0_i32_49 = arith.constant 0 : i32
    %64 = tpu.memref_slice %arg3[%30, %c0_i32_49] : memref<32x16xf32, #tpu.memory_space<any>> -> memref<1x16xf32, #tpu.memory_space<any>>
    %c6_i32_50 = arith.constant 6 : i32
    %c0_i32_51 = arith.constant 0 : i32
    %65 = tpu.memref_slice %arg8[%c6_i32_50, %c0_i32_51] : memref<8x16xf32, #tpu.memory_space<vmem>> -> memref<1x16xf32, #tpu.memory_space<vmem>>
    %66 = tpu.memref_slice %arg9[%c6_i32_48] : memref<8x!tpu.dma_semaphore, #tpu.memory_space<semaphore_mem>> -> memref<1x!tpu.dma_semaphore, #tpu.memory_space<semaphore_mem>>
    %67 = tpu.memref_squeeze %66 : memref<1x!tpu.dma_semaphore, #tpu.memory_space<semaphore_mem>> -> memref<!tpu.dma_semaphore, #tpu.memory_space<semaphore_mem>>
    tpu.wait_dma2 semaphore(%67 : memref<!tpu.dma_semaphore, #tpu.memory_space<semaphore_mem>>) src(%64 : memref<1x16xf32, #tpu.memory_space<any>>) dst(%65 : memref<1x16xf32, #tpu.memory_space<vmem>>)
    %c7_i32_52 = arith.constant 7 : i32
    %c0_i32_53 = arith.constant 0 : i32
    %68 = tpu.memref_slice %arg3[%35, %c0_i32_53] : memref<32x16xf32, #tpu.memory_space<any>> -> memref<1x16xf32, #tpu.memory_space<any>>
    %c7_i32_54 = arith.constant 7 : i32
    %c0_i32_55 = arith.constant 0 : i32
    %69 = tpu.memref_slice %arg8[%c7_i32_54, %c0_i32_55] : memref<8x16xf32, #tpu.memory_space<vmem>> -> memref<1x16xf32, #tpu.memory_space<vmem>>
    %70 = tpu.memref_slice %arg9[%c7_i32_52] : memref<8x!tpu.dma_semaphore, #tpu.memory_space<semaphore_mem>> -> memref<1x!tpu.dma_semaphore, #tpu.memory_space<semaphore_mem>>
    %71 = tpu.memref_squeeze %70 : memref<1x!tpu.dma_semaphore, #tpu.memory_space<semaphore_mem>> -> memref<!tpu.dma_semaphore, #tpu.memory_space<semaphore_mem>>
    tpu.wait_dma2 semaphore(%71 : memref<!tpu.dma_semaphore, #tpu.memory_space<semaphore_mem>>) src(%68 : memref<1x16xf32, #tpu.memory_space<any>>) dst(%69 : memref<1x16xf32, #tpu.memory_space<vmem>>)
    %c0_56 = arith.constant 0 : index
    %c0_57 = arith.constant 0 : index
    %72 = vector.load %arg8[%c0_56, %c0_57] : memref<8x16xf32, #tpu.memory_space<vmem>>, vector<8x16xf32>
    %c0_58 = arith.constant 0 : index
    %c0_59 = arith.constant 0 : index
    %73 = vector.load %arg4[%c0_58, %c0_59] : memref<16x128xf32, #tpu.memory_space<vmem>>, vector<16x128xf32>
    %cst = arith.constant dense<0.000000e+00> : vector<8x128xf32>
    %74 = tpu.matmul %72, %73, %cst {dimension_numbers = #tpu.dot_dimension_numbers<[1], [0], [0], [1], [0, 0, 1, 1], [], []>} : vector<8x16xf32>, vector<16x128xf32>, vector<8x128xf32> -> vector<8x128xf32>
    %c0_60 = arith.constant 0 : index
    %c0_61 = arith.constant 0 : index
    %75 = vector.load %arg6[%c0_60, %c0_61] : memref<1x128xf32, #tpu.memory_space<vmem>>, vector<1x128xf32>
    %76 = vector.broadcast %75 : vector<1x128xf32> to vector<8x128xf32>
    %77 = arith.addf %74, %76 : vector<8x128xf32>
    %c0_62 = arith.constant 0 : index
    %c0_63 = arith.constant 0 : index
    %78 = vector.load %arg5[%c0_62, %c0_63] : memref<32x128xf32, #tpu.memory_space<vmem>>, vector<32x128xf32>
    %79 = tpu.iota {dimensions = array<i32: 1>} : vector<1x128xi32>
    %c64_i32 = arith.constant 64 : i32
    %80 = vector.broadcast %c64_i32 : i32 to vector<1x128xi32>
    %81 = arith.cmpi sge, %79, %80 : vector<1x128xi32>
    %c96_i32 = arith.constant 96 : i32
    %82 = vector.broadcast %c96_i32 : i32 to vector<1x128xi32>
    %83 = arith.cmpi slt, %79, %82 : vector<1x128xi32>
    %84 = arith.andi %81, %83 : vector<1x128xi1>
    %cst_64 = arith.constant 1.000000e+00 : f32
    %cst_65 = arith.constant 5.000000e-01 : f32
    %85 = vector.broadcast %cst_64 : f32 to vector<1x128xf32>
    %86 = vector.broadcast %cst_65 : f32 to vector<1x128xf32>
    %87 = arith.select %84, %85, %86 : vector<1x128xi1>, vector<1x128xf32>
    %cst_66 = arith.constant 0.000000e+00 : f32
    %cst_67 = arith.constant 5.000000e-01 : f32
    %88 = vector.broadcast %cst_66 : f32 to vector<1x128xf32>
    %89 = vector.broadcast %cst_67 : f32 to vector<1x128xf32>
    %90 = arith.select %84, %88, %89 : vector<1x128xi1>, vector<1x128xf32>
    %cst_68 = arith.constant 0.000000e+00 : f32
    %91 = vector.broadcast %cst_68 : f32 to vector<1x32xf32>
    %cst_69 = arith.constant 0.000000e+00 : f32
    %92 = vector.broadcast %cst_69 : f32 to vector<1x32xf32>
    %cst_70 = arith.constant 0.000000e+00 : f32
    %93 = vector.broadcast %cst_70 : f32 to vector<1x32xf32>
    %94 = vector.extract_strided_slice %77 {offsets = [0, 0], sizes = [1, 128], strides = [1, 1]} : vector<8x128xf32> to vector<1x128xf32>
    %cst_71 = arith.constant dense<0.000000e+00> : vector<1x128xf32>
    %95 = tpu.matmul %91, %78, %cst_71 {dimension_numbers = #tpu.dot_dimension_numbers<[1], [0], [0], [1], [0, 0, 1, 1], [], []>} : vector<1x32xf32>, vector<32x128xf32>, vector<1x128xf32> -> vector<1x128xf32>
    %96 = arith.addf %94, %95 : vector<1x128xf32>
    %97 = arith.mulf %96, %87 : vector<1x128xf32>
    %98 = math.tanh %97 : vector<1x128xf32>
    %99 = arith.mulf %98, %87 : vector<1x128xf32>
    %100 = arith.addf %99, %90 : vector<1x128xf32>
    %101 = vector.extract_strided_slice %100 {offsets = [0, 0], sizes = [1, 32], strides = [1, 1]} : vector<1x128xf32> to vector<1x32xf32>
    %102 = vector.extract_strided_slice %100 {offsets = [0, 32], sizes = [1, 32], strides = [1, 1]} : vector<1x128xf32> to vector<1x32xf32>
    %103 = vector.extract_strided_slice %100 {offsets = [0, 64], sizes = [1, 32], strides = [1, 1]} : vector<1x128xf32> to vector<1x32xf32>
    %104 = vector.extract_strided_slice %100 {offsets = [0, 96], sizes = [1, 32], strides = [1, 1]} : vector<1x128xf32> to vector<1x32xf32>
    %105 = arith.mulf %102, %92 : vector<1x32xf32>
    %106 = arith.mulf %101, %103 : vector<1x32xf32>
    %107 = arith.addf %105, %106 : vector<1x32xf32>
    %108 = math.tanh %107 : vector<1x32xf32>
    %109 = arith.mulf %104, %108 : vector<1x32xf32>
    %c0_72 = arith.constant 0 : index
    %110 = memref.load %arg1[%c0_72] : memref<8xf32, #tpu.memory_space<smem>>
    %111 = vector.broadcast %110 : f32 to vector<1x32xf32>
    %112 = arith.mulf %111, %109 : vector<1x32xf32>
    %113 = arith.addf %93, %112 : vector<1x32xf32>
    %114 = vector.extract_strided_slice %77 {offsets = [1, 0], sizes = [1, 128], strides = [1, 1]} : vector<8x128xf32> to vector<1x128xf32>
    %cst_73 = arith.constant dense<0.000000e+00> : vector<1x128xf32>
    %115 = tpu.matmul %109, %78, %cst_73 {dimension_numbers = #tpu.dot_dimension_numbers<[1], [0], [0], [1], [0, 0, 1, 1], [], []>} : vector<1x32xf32>, vector<32x128xf32>, vector<1x128xf32> -> vector<1x128xf32>
    %116 = arith.addf %114, %115 : vector<1x128xf32>
    %117 = arith.mulf %116, %87 : vector<1x128xf32>
    %118 = math.tanh %117 : vector<1x128xf32>
    %119 = arith.mulf %118, %87 : vector<1x128xf32>
    %120 = arith.addf %119, %90 : vector<1x128xf32>
    %121 = vector.extract_strided_slice %120 {offsets = [0, 0], sizes = [1, 32], strides = [1, 1]} : vector<1x128xf32> to vector<1x32xf32>
    %122 = vector.extract_strided_slice %120 {offsets = [0, 32], sizes = [1, 32], strides = [1, 1]} : vector<1x128xf32> to vector<1x32xf32>
    %123 = vector.extract_strided_slice %120 {offsets = [0, 64], sizes = [1, 32], strides = [1, 1]} : vector<1x128xf32> to vector<1x32xf32>
    %124 = vector.extract_strided_slice %120 {offsets = [0, 96], sizes = [1, 32], strides = [1, 1]} : vector<1x128xf32> to vector<1x32xf32>
    %125 = arith.mulf %122, %107 : vector<1x32xf32>
    %126 = arith.mulf %121, %123 : vector<1x32xf32>
    %127 = arith.addf %125, %126 : vector<1x32xf32>
    %128 = math.tanh %127 : vector<1x32xf32>
    %129 = arith.mulf %124, %128 : vector<1x32xf32>
    %c1_74 = arith.constant 1 : index
    %130 = memref.load %arg1[%c1_74] : memref<8xf32, #tpu.memory_space<smem>>
    %131 = vector.broadcast %130 : f32 to vector<1x32xf32>
    %132 = arith.mulf %131, %129 : vector<1x32xf32>
    %133 = arith.addf %113, %132 : vector<1x32xf32>
    %134 = vector.extract_strided_slice %77 {offsets = [2, 0], sizes = [1, 128], strides = [1, 1]} : vector<8x128xf32> to vector<1x128xf32>
    %cst_75 = arith.constant dense<0.000000e+00> : vector<1x128xf32>
    %135 = tpu.matmul %129, %78, %cst_75 {dimension_numbers = #tpu.dot_dimension_numbers<[1], [0], [0], [1], [0, 0, 1, 1], [], []>} : vector<1x32xf32>, vector<32x128xf32>, vector<1x128xf32> -> vector<1x128xf32>
    %136 = arith.addf %134, %135 : vector<1x128xf32>
    %137 = arith.mulf %136, %87 : vector<1x128xf32>
    %138 = math.tanh %137 : vector<1x128xf32>
    %139 = arith.mulf %138, %87 : vector<1x128xf32>
    %140 = arith.addf %139, %90 : vector<1x128xf32>
    %141 = vector.extract_strided_slice %140 {offsets = [0, 0], sizes = [1, 32], strides = [1, 1]} : vector<1x128xf32> to vector<1x32xf32>
    %142 = vector.extract_strided_slice %140 {offsets = [0, 32], sizes = [1, 32], strides = [1, 1]} : vector<1x128xf32> to vector<1x32xf32>
    %143 = vector.extract_strided_slice %140 {offsets = [0, 64], sizes = [1, 32], strides = [1, 1]} : vector<1x128xf32> to vector<1x32xf32>
    %144 = vector.extract_strided_slice %140 {offsets = [0, 96], sizes = [1, 32], strides = [1, 1]} : vector<1x128xf32> to vector<1x32xf32>
    %145 = arith.mulf %142, %127 : vector<1x32xf32>
    %146 = arith.mulf %141, %143 : vector<1x32xf32>
    %147 = arith.addf %145, %146 : vector<1x32xf32>
    %148 = math.tanh %147 : vector<1x32xf32>
    %149 = arith.mulf %144, %148 : vector<1x32xf32>
    %c2_76 = arith.constant 2 : index
    %150 = memref.load %arg1[%c2_76] : memref<8xf32, #tpu.memory_space<smem>>
    %151 = vector.broadcast %150 : f32 to vector<1x32xf32>
    %152 = arith.mulf %151, %149 : vector<1x32xf32>
    %153 = arith.addf %133, %152 : vector<1x32xf32>
    %154 = vector.extract_strided_slice %77 {offsets = [3, 0], sizes = [1, 128], strides = [1, 1]} : vector<8x128xf32> to vector<1x128xf32>
    %cst_77 = arith.constant dense<0.000000e+00> : vector<1x128xf32>
    %155 = tpu.matmul %149, %78, %cst_77 {dimension_numbers = #tpu.dot_dimension_numbers<[1], [0], [0], [1], [0, 0, 1, 1], [], []>} : vector<1x32xf32>, vector<32x128xf32>, vector<1x128xf32> -> vector<1x128xf32>
    %156 = arith.addf %154, %155 : vector<1x128xf32>
    %157 = arith.mulf %156, %87 : vector<1x128xf32>
    %158 = math.tanh %157 : vector<1x128xf32>
    %159 = arith.mulf %158, %87 : vector<1x128xf32>
    %160 = arith.addf %159, %90 : vector<1x128xf32>
    %161 = vector.extract_strided_slice %160 {offsets = [0, 0], sizes = [1, 32], strides = [1, 1]} : vector<1x128xf32> to vector<1x32xf32>
    %162 = vector.extract_strided_slice %160 {offsets = [0, 32], sizes = [1, 32], strides = [1, 1]} : vector<1x128xf32> to vector<1x32xf32>
    %163 = vector.extract_strided_slice %160 {offsets = [0, 64], sizes = [1, 32], strides = [1, 1]} : vector<1x128xf32> to vector<1x32xf32>
    %164 = vector.extract_strided_slice %160 {offsets = [0, 96], sizes = [1, 32], strides = [1, 1]} : vector<1x128xf32> to vector<1x32xf32>
    %165 = arith.mulf %162, %147 : vector<1x32xf32>
    %166 = arith.mulf %161, %163 : vector<1x32xf32>
    %167 = arith.addf %165, %166 : vector<1x32xf32>
    %168 = math.tanh %167 : vector<1x32xf32>
    %169 = arith.mulf %164, %168 : vector<1x32xf32>
    %c3_78 = arith.constant 3 : index
    %170 = memref.load %arg1[%c3_78] : memref<8xf32, #tpu.memory_space<smem>>
    %171 = vector.broadcast %170 : f32 to vector<1x32xf32>
    %172 = arith.mulf %171, %169 : vector<1x32xf32>
    %173 = arith.addf %153, %172 : vector<1x32xf32>
    %174 = vector.extract_strided_slice %77 {offsets = [4, 0], sizes = [1, 128], strides = [1, 1]} : vector<8x128xf32> to vector<1x128xf32>
    %cst_79 = arith.constant dense<0.000000e+00> : vector<1x128xf32>
    %175 = tpu.matmul %169, %78, %cst_79 {dimension_numbers = #tpu.dot_dimension_numbers<[1], [0], [0], [1], [0, 0, 1, 1], [], []>} : vector<1x32xf32>, vector<32x128xf32>, vector<1x128xf32> -> vector<1x128xf32>
    %176 = arith.addf %174, %175 : vector<1x128xf32>
    %177 = arith.mulf %176, %87 : vector<1x128xf32>
    %178 = math.tanh %177 : vector<1x128xf32>
    %179 = arith.mulf %178, %87 : vector<1x128xf32>
    %180 = arith.addf %179, %90 : vector<1x128xf32>
    %181 = vector.extract_strided_slice %180 {offsets = [0, 0], sizes = [1, 32], strides = [1, 1]} : vector<1x128xf32> to vector<1x32xf32>
    %182 = vector.extract_strided_slice %180 {offsets = [0, 32], sizes = [1, 32], strides = [1, 1]} : vector<1x128xf32> to vector<1x32xf32>
    %183 = vector.extract_strided_slice %180 {offsets = [0, 64], sizes = [1, 32], strides = [1, 1]} : vector<1x128xf32> to vector<1x32xf32>
    %184 = vector.extract_strided_slice %180 {offsets = [0, 96], sizes = [1, 32], strides = [1, 1]} : vector<1x128xf32> to vector<1x32xf32>
    %185 = arith.mulf %182, %167 : vector<1x32xf32>
    %186 = arith.mulf %181, %183 : vector<1x32xf32>
    %187 = arith.addf %185, %186 : vector<1x32xf32>
    %188 = math.tanh %187 : vector<1x32xf32>
    %189 = arith.mulf %184, %188 : vector<1x32xf32>
    %c4_80 = arith.constant 4 : index
    %190 = memref.load %arg1[%c4_80] : memref<8xf32, #tpu.memory_space<smem>>
    %191 = vector.broadcast %190 : f32 to vector<1x32xf32>
    %192 = arith.mulf %191, %189 : vector<1x32xf32>
    %193 = arith.addf %173, %192 : vector<1x32xf32>
    %194 = vector.extract_strided_slice %77 {offsets = [5, 0], sizes = [1, 128], strides = [1, 1]} : vector<8x128xf32> to vector<1x128xf32>
    %cst_81 = arith.constant dense<0.000000e+00> : vector<1x128xf32>
    %195 = tpu.matmul %189, %78, %cst_81 {dimension_numbers = #tpu.dot_dimension_numbers<[1], [0], [0], [1], [0, 0, 1, 1], [], []>} : vector<1x32xf32>, vector<32x128xf32>, vector<1x128xf32> -> vector<1x128xf32>
    %196 = arith.addf %194, %195 : vector<1x128xf32>
    %197 = arith.mulf %196, %87 : vector<1x128xf32>
    %198 = math.tanh %197 : vector<1x128xf32>
    %199 = arith.mulf %198, %87 : vector<1x128xf32>
    %200 = arith.addf %199, %90 : vector<1x128xf32>
    %201 = vector.extract_strided_slice %200 {offsets = [0, 0], sizes = [1, 32], strides = [1, 1]} : vector<1x128xf32> to vector<1x32xf32>
    %202 = vector.extract_strided_slice %200 {offsets = [0, 32], sizes = [1, 32], strides = [1, 1]} : vector<1x128xf32> to vector<1x32xf32>
    %203 = vector.extract_strided_slice %200 {offsets = [0, 64], sizes = [1, 32], strides = [1, 1]} : vector<1x128xf32> to vector<1x32xf32>
    %204 = vector.extract_strided_slice %200 {offsets = [0, 96], sizes = [1, 32], strides = [1, 1]} : vector<1x128xf32> to vector<1x32xf32>
    %205 = arith.mulf %202, %187 : vector<1x32xf32>
    %206 = arith.mulf %201, %203 : vector<1x32xf32>
    %207 = arith.addf %205, %206 : vector<1x32xf32>
    %208 = math.tanh %207 : vector<1x32xf32>
    %209 = arith.mulf %204, %208 : vector<1x32xf32>
    %c5_82 = arith.constant 5 : index
    %210 = memref.load %arg1[%c5_82] : memref<8xf32, #tpu.memory_space<smem>>
    %211 = vector.broadcast %210 : f32 to vector<1x32xf32>
    %212 = arith.mulf %211, %209 : vector<1x32xf32>
    %213 = arith.addf %193, %212 : vector<1x32xf32>
    %214 = vector.extract_strided_slice %77 {offsets = [6, 0], sizes = [1, 128], strides = [1, 1]} : vector<8x128xf32> to vector<1x128xf32>
    %cst_83 = arith.constant dense<0.000000e+00> : vector<1x128xf32>
    %215 = tpu.matmul %209, %78, %cst_83 {dimension_numbers = #tpu.dot_dimension_numbers<[1], [0], [0], [1], [0, 0, 1, 1], [], []>} : vector<1x32xf32>, vector<32x128xf32>, vector<1x128xf32> -> vector<1x128xf32>
    %216 = arith.addf %214, %215 : vector<1x128xf32>
    %217 = arith.mulf %216, %87 : vector<1x128xf32>
    %218 = math.tanh %217 : vector<1x128xf32>
    %219 = arith.mulf %218, %87 : vector<1x128xf32>
    %220 = arith.addf %219, %90 : vector<1x128xf32>
    %221 = vector.extract_strided_slice %220 {offsets = [0, 0], sizes = [1, 32], strides = [1, 1]} : vector<1x128xf32> to vector<1x32xf32>
    %222 = vector.extract_strided_slice %220 {offsets = [0, 32], sizes = [1, 32], strides = [1, 1]} : vector<1x128xf32> to vector<1x32xf32>
    %223 = vector.extract_strided_slice %220 {offsets = [0, 64], sizes = [1, 32], strides = [1, 1]} : vector<1x128xf32> to vector<1x32xf32>
    %224 = vector.extract_strided_slice %220 {offsets = [0, 96], sizes = [1, 32], strides = [1, 1]} : vector<1x128xf32> to vector<1x32xf32>
    %225 = arith.mulf %222, %207 : vector<1x32xf32>
    %226 = arith.mulf %221, %223 : vector<1x32xf32>
    %227 = arith.addf %225, %226 : vector<1x32xf32>
    %228 = math.tanh %227 : vector<1x32xf32>
    %229 = arith.mulf %224, %228 : vector<1x32xf32>
    %c6_84 = arith.constant 6 : index
    %230 = memref.load %arg1[%c6_84] : memref<8xf32, #tpu.memory_space<smem>>
    %231 = vector.broadcast %230 : f32 to vector<1x32xf32>
    %232 = arith.mulf %231, %229 : vector<1x32xf32>
    %233 = arith.addf %213, %232 : vector<1x32xf32>
    %234 = vector.extract_strided_slice %77 {offsets = [7, 0], sizes = [1, 128], strides = [1, 1]} : vector<8x128xf32> to vector<1x128xf32>
    %cst_85 = arith.constant dense<0.000000e+00> : vector<1x128xf32>
    %235 = tpu.matmul %229, %78, %cst_85 {dimension_numbers = #tpu.dot_dimension_numbers<[1], [0], [0], [1], [0, 0, 1, 1], [], []>} : vector<1x32xf32>, vector<32x128xf32>, vector<1x128xf32> -> vector<1x128xf32>
    %236 = arith.addf %234, %235 : vector<1x128xf32>
    %237 = arith.mulf %236, %87 : vector<1x128xf32>
    %238 = math.tanh %237 : vector<1x128xf32>
    %239 = arith.mulf %238, %87 : vector<1x128xf32>
    %240 = arith.addf %239, %90 : vector<1x128xf32>
    %241 = vector.extract_strided_slice %240 {offsets = [0, 0], sizes = [1, 32], strides = [1, 1]} : vector<1x128xf32> to vector<1x32xf32>
    %242 = vector.extract_strided_slice %240 {offsets = [0, 32], sizes = [1, 32], strides = [1, 1]} : vector<1x128xf32> to vector<1x32xf32>
    %243 = vector.extract_strided_slice %240 {offsets = [0, 64], sizes = [1, 32], strides = [1, 1]} : vector<1x128xf32> to vector<1x32xf32>
    %244 = vector.extract_strided_slice %240 {offsets = [0, 96], sizes = [1, 32], strides = [1, 1]} : vector<1x128xf32> to vector<1x32xf32>
    %245 = arith.mulf %242, %227 : vector<1x32xf32>
    %246 = arith.mulf %241, %243 : vector<1x32xf32>
    %247 = arith.addf %245, %246 : vector<1x32xf32>
    %248 = math.tanh %247 : vector<1x32xf32>
    %249 = arith.mulf %244, %248 : vector<1x32xf32>
    %c7_86 = arith.constant 7 : index
    %250 = memref.load %arg1[%c7_86] : memref<8xf32, #tpu.memory_space<smem>>
    %251 = vector.broadcast %250 : f32 to vector<1x32xf32>
    %252 = arith.mulf %251, %249 : vector<1x32xf32>
    %253 = arith.addf %233, %252 : vector<1x32xf32>
    %254 = vector.shape_cast %253 : vector<1x32xf32> to vector<1x1x32xf32>
    %cst_87 = arith.constant dense<0.000000e+00> : vector<1xf32>
    %255 = vector.multi_reduction <add>, %254, %cst_87 [1, 2] : vector<1x1x32xf32> to vector<1xf32>
    %256 = vector.shape_cast %255 : vector<1xf32> to vector<1x1x1xf32>
    %257 = vector.extract %256[0, 0, 0] : f32 from vector<1x1x1xf32>
    %cst_88 = arith.constant 3.125000e-02 : f32
    %258 = arith.mulf %257, %cst_88 : f32
    %c0_89 = arith.constant 0 : index
    %259 = memref.load %arg2[%c0_89] : memref<1xf32, #tpu.memory_space<smem>>
    %260 = arith.addf %258, %259 : f32
    %261 = vector.broadcast %260 : f32 to vector<1x128xf32>
    %c0_90 = arith.constant 0 : index
    %c0_91 = arith.constant 0 : index
    %262 = vector.load %arg7[%c0_90, %c0_91] : memref<1x128xf32, #tpu.memory_space<vmem>>, vector<1x128xf32>
    tpu.vector_store %arg7[%c0_90, %c0_91], %261 {strides = array<i32>} : memref<1x128xf32, #tpu.memory_space<vmem>>, vector<1x128xf32>,
    return
  }
}

</mosaic_0001>

<llo_original>
// kernel: tpu_custom_call.1
$region0: #{tpu_custom_call.1}
  #allocation0 [shape = 'u32[]', space=smem, size = 0x4, offset = 0x4, fixed_abs, tag = 'smem constant byte address 0x4 - core index']
  #allocation1 [shape = 'u32[144,128]{1,0:T(1,128)}', space=vmem, size = 0x12000, scoped, tag = 'internal scratch']
  #allocation2 [shape = 'f32[8,16]{1,0:T(8,128)}', space=vmem, size = 0x1000, scoped, tag = 'scratch operand']
  #allocation3 [shape = 's32[8]{0}', space=sflag, size = 0x20, scoped, tag = 'scratch operand']
  #allocation4 [shape = 'f32[1]{0:T(128)S(6)}', space=smem, size = 0x200, scoped, tag = 'scoped memory for tpu_custom_call.1']
  #allocation11 [shape = 's32[]', space=sflag, size = 0x4, offset = 0, fixed_abs, tag = 'sflag constant byte address 0x0 - dummy sync flag']
  #allocation12 [shape = 's32[]', space=sflag, size = 0x4, offset = 0, fixed_abs, tag = 'sflag constant byte address 0x0 - dummy sync flag']
  #allocation13 [shape = 's32[]', space=sflag, size = 0x4, offset = 0, fixed_abs, tag = 'sflag constant byte address 0x0 - dummy sync flag']
  #allocation14 [shape = 's32[]', space=sflag, size = 0x4, offset = 0, fixed_abs, tag = 'sflag constant byte address 0x0 - dummy sync flag']
  #allocation15 [shape = 's32[]', space=sflag, size = 0x4, offset = 0, fixed_abs, tag = 'sflag constant byte address 0x0 - dummy sync flag']
  #allocation16 [shape = 's32[]', space=sflag, size = 0x4, offset = 0, fixed_abs, tag = 'sflag constant byte address 0x0 - dummy sync flag']
  #allocation17 [shape = 's32[]', space=sflag, size = 0x4, offset = 0, fixed_abs, tag = 'sflag constant byte address 0x0 - dummy sync flag']
  #allocation18 [shape = 's32[]', space=sflag, size = 0x4, offset = 0, fixed_abs, tag = 'sflag constant byte address 0x0 - dummy sync flag']
  %s0 = inlined_call_operand.vmem [shape: s32[8], index: 0, kind: input, shape index: {}]
  %s1 = inlined_call_operand.vmem [shape: f32[8], index: 1, kind: input, shape index: {}]
  %s2 = inlined_call_operand.<no memory space> [shape: f32[1], index: 2, kind: input, shape index: {}]
  %s3 = inlined_call_operand.vmem [shape: f32[32,16], index: 3, kind: input, shape index: {}]
  %s4 = inlined_call_operand.vmem [shape: f32[16,128], index: 4, kind: input, shape index: {}]
  %s5 = inlined_call_operand.vmem [shape: f32[32,128], index: 5, kind: input, shape index: {}]
  %s6 = inlined_call_operand.vmem [shape: f32[1,128], index: 6, kind: input, shape index: {}]
  %s7 = inlined_call_operand.hbm [shape: f32[1,128], index: 7, kind: output, shape index: {}]
  %s8 = sld [smem:[#allocation0]]
  $region282: #{tpu_custom_call.1} parent=0
    _
  %s10 = ssub.s32 1, %s8
  %s11 = scalar_select 0, %s10, %s8
  %12 = sst [smem:[#allocation4]] %s2
  $region1: #{tpu_custom_call.1} parent=0
    #allocation5 [shape = 'u8[512]{0}', space=smem, size = 0x200, scoped, tag = 'input window, operand 0, single buffered']
    #allocation6 [shape = 's32[1]{0}', space=sflag, size = 0x4, scoped, tag = 'scoped memory for tpu_custom_call.1']
    #allocation7 [shape = 's32[1]{0}', space=sflag, size = 0x4, scoped, tag = 'scoped memory for tpu_custom_call.1']
    #allocation8 [shape = 'u8[512]{0}', space=smem, size = 0x200, scoped, tag = 'input window, operand 1, single buffered']
    #allocation9 [shape = 's32[1]{0}', space=sflag, size = 0x4, scoped, tag = 'scoped memory for tpu_custom_call.1']
    #allocation10 [shape = 'u8[512]{0}', space=vmem, size = 0x400, scoped, tag = 'output window, operand 0, single buffered']
    %13 = vsyncpa [#allocation7], 0
    %14 = vsyncpa [#allocation9], 0
    %15 = vsyncpa [#allocation6], 0
    // Predicated region
    $region2: #{tpu_custom_call.1} parent=1 // pred_check
      _
    $region3: #{tpu_custom_call.1} parent=1 // pred_check_branch
      %17 = sbr.rel (0) target = $region5
    $region4: #{tpu_custom_call.1} parent=1 // pred_region
      %s19 = ssub.s32 16, 16
      %20 = vsyncadd [#allocation7], %s19
      %s22 = sshll.u32 %s0, 4
      %s23 = int_to_ptr.vmem [resolvable:$true] %s22
      %25 = dma.vmem_to_smem %s23, 16, [#allocation5], [#allocation7]
    $region5: #{tpu_custom_call.1} parent=1 // pred_fallthru
      _
    // Predicated region
    $region6: #{tpu_custom_call.1} parent=1 // pred_check
      _
    $region7: #{tpu_custom_call.1} parent=1 // pred_check_branch
      %27 = sbr.rel (0) target = $region9
    $region8: #{tpu_custom_call.1} parent=1 // pred_region
      %s29 = ssub.s32 16, 16
      %30 = vsyncadd [#allocation9], %s29
      %s32 = sshll.u32 %s1, 4
      %s33 = int_to_ptr.vmem [resolvable:$true] %s32
      %35 = dma.vmem_to_smem %s33, 16, [#allocation8], [#allocation9]
    $region9: #{tpu_custom_call.1} parent=1 // pred_fallthru
      _
    // Predicated region
    $region10: #{tpu_custom_call.1} parent=1 // pred_check
      _
    $region11: #{tpu_custom_call.1} parent=1 // pred_check_branch
      %37 = sbr.rel (0) target = $region13
    $region12: #{tpu_custom_call.1} parent=1 // pred_region
      _
    $region13: #{tpu_custom_call.1} parent=1 // pred_fallthru
      _
    // Predicated region
    $region14: #{tpu_custom_call.1} parent=1 // pred_check
      _
    $region15: #{tpu_custom_call.1} parent=1 // pred_check_branch
      %39 = sbr.rel (0) target = $region17
    $region16: #{tpu_custom_call.1} parent=1 // pred_region
      _
    $region17: #{tpu_custom_call.1} parent=1 // pred_fallthru
      _
    // Predicated region
    $region18: #{tpu_custom_call.1} parent=1 // pred_check
      _
    $region19: #{tpu_custom_call.1} parent=1 // pred_check_branch
      %41 = sbr.rel (0) target = $region21
    $region20: #{tpu_custom_call.1} parent=1 // pred_region
      _
    $region21: #{tpu_custom_call.1} parent=1 // pred_fallthru
      _
    // Predicated region
    $region22: #{tpu_custom_call.1} parent=1 // pred_check
      _
    $region23: #{tpu_custom_call.1} parent=1 // pred_check_branch
      %43 = sbr.rel (0) target = $region25
    $region24: #{tpu_custom_call.1} parent=1 // pred_region
      _
    $region25: #{tpu_custom_call.1} parent=1 // pred_fallthru
      _
    // Predicated region
    $region26: #{tpu_custom_call.1} parent=1 // pred_check
      _
    $region27: #{tpu_custom_call.1} parent=1 // pred_check_branch
      %45 = sbr.rel (0) target = $region29
    $region28: #{tpu_custom_call.1} parent=1 // pred_region
      %46 = dma.done [#allocation7], 16
    $region29: #{tpu_custom_call.1} parent=1 // pred_fallthru
      _
    // Predicated region
    $region30: #{tpu_custom_call.1} parent=1 // pred_check
      _
    $region31: #{tpu_custom_call.1} parent=1 // pred_check_branch
      %48 = sbr.rel (0) target = $region33
    $region32: #{tpu_custom_call.1} parent=1 // pred_region
      %49 = dma.done [#allocation9], 16
    $region33: #{tpu_custom_call.1} parent=1 // pred_fallthru
      _
    %50 = sfence
    %s51 = sld [smem:[#allocation5]]
    %s52 = scalar_lea.vmem %s3, %s51
    %p54 = scmp.lt.u32.totalorder 1, 8
    %p55 = pneg %p54
    // Predicated region
    $region34: #{tpu_custom_call.1} parent=1 // pred_check
      _
    $region35: #{tpu_custom_call.1} parent=1 // pred_check_branch
      %57 = sbr.rel (%p54) target = $region37
    $region36: #{tpu_custom_call.1} parent=1 // pred_region
      %s72 = sand.u32 1, 7
      %p73 = scmp.eq.s32.totalorder %s72, 0
      %p74 = pneg %p73
      // Predicated region
      $region49: #{tpu_custom_call.1} parent=36 // pred_check
        _
      $region50: #{tpu_custom_call.1} parent=36 // pred_check_branch
        %76 = sbr.rel (%p73) target = $region52
      $region51: #{tpu_custom_call.1} parent=36 // pred_region
        %s77 = sand.u32 1, 7
        %s78 = ssub.s32 1, %s77
        %s79 = scalar_lea.vmem %s52, %s78
        %s80 = ssub.s32 1, %s77
        %s81 = scalar_lea.vmem [#allocation2], %s80
        %s82 = sshllo.u32 0, %s77
        loop: start=0, step=1, limit=1
        $region53: #{tpu_custom_call.1} parent=51 // loop_pre_header
          _
        $region54: #{tpu_custom_call.1} parent=51 // loop_header
          %s84 = sphi 0, %s88
          %p85 = scmp.ge.s32.totalorder %s84, 1
          %s89 = sphi %s79, %s79
          %s90 = sphi %s81, %s81
        $region55: #{tpu_custom_call.1} parent=51 // loop_header_branch
          %87 = sbr.rel (%p85) target = $region59
        $region56: #{tpu_custom_call.1} parent=51 // loop_body
          %v91 = vld [vmem:[%s89] sm:%s82]
          %92 = vst [vmem:[%s90] sm:%s82] %v91
        $region57: #{tpu_custom_call.1} parent=51 // loop_footer
          %s88 = sadd.s32 1, %s84
        $region58: #{tpu_custom_call.1} parent=51 // loop_footer_branch
          %83 = sbr.rel target = $region54
        $region59: #{tpu_custom_call.1} parent=51 // loop_exit
          _
      $region52: #{tpu_custom_call.1} parent=36 // pred_fallthru
        _
    $region37: #{tpu_custom_call.1} parent=1 // pred_fallthru
      _
    // Predicated region
    $region38: #{tpu_custom_call.1} parent=1 // pred_check
      %p58 = pneg %p54
    $region39: #{tpu_custom_call.1} parent=1 // pred_check_branch
      %60 = sbr.rel (%p58) target = $region41
    $region40: #{tpu_custom_call.1} parent=1 // pred_region
      %s61 = sshllo.u32 0, 1
      loop: start=0, step=1, limit=1
      $region42: #{tpu_custom_call.1} parent=40 // loop_pre_header
        _
      $region43: #{tpu_custom_call.1} parent=40 // loop_header
        %s63 = sphi 0, %s67
        %p64 = scmp.ge.s32.totalorder %s63, 1
        %s68 = sphi %s52, %s52
        %s69 = sphi [#allocation2], [#allocation2]
      $region44: #{tpu_custom_call.1} parent=40 // loop_header_branch
        %66 = sbr.rel (%p64) target = $region48
      $region45: #{tpu_custom_call.1} parent=40 // loop_body
        %v70 = vld [vmem:[%s68] sm:%s61]
        %71 = vst [vmem:[%s69] sm:%s61] %v70
      $region46: #{tpu_custom_call.1} parent=40 // loop_footer
        %s67 = sadd.s32 1, %s63
      $region47: #{tpu_custom_call.1} parent=40 // loop_footer_branch
        %62 = sbr.rel target = $region43
      $region48: #{tpu_custom_call.1} parent=40 // loop_exit
        _
    $region41: #{tpu_custom_call.1} parent=1 // pred_fallthru
      _
    // Predicated region
    $region60: #{tpu_custom_call.1} parent=1 // pred_check
      _
    $region61: #{tpu_custom_call.1} parent=1 // pred_check_branch
      %95 = sbr.rel (0) target = $region63
    $region62: #{tpu_custom_call.1} parent=1 // pred_region
      %96 = vsyncadd [#allocation3], 16
    $region63: #{tpu_custom_call.1} parent=1 // pred_fallthru
      _
    %s97 = sld [smem:[#allocation5 + $0x1]]
    %s98 = scalar_lea.vmem %s3, %s97
    %s99 = scalar_lea.vmem [#allocation2], 1
    %s100 = scalar_lea.sflag [#allocation3], 1
    %p102 = scmp.lt.u32.totalorder 1, 8
    %p103 = pneg %p102
    // Predicated region
    $region64: #{tpu_custom_call.1} parent=1 // pred_check
      _
    $region65: #{tpu_custom_call.1} parent=1 // pred_check_branch
      %105 = sbr.rel (%p102) target = $region67
    $region66: #{tpu_custom_call.1} parent=1 // pred_region
      %s120 = sand.u32 1, 7
      %p121 = scmp.eq.s32.totalorder %s120, 0
      %p122 = pneg %p121
      // Predicated region
      $region79: #{tpu_custom_call.1} parent=66 // pred_check
        _
      $region80: #{tpu_custom_call.1} parent=66 // pred_check_branch
        %124 = sbr.rel (%p121) target = $region82
      $region81: #{tpu_custom_call.1} parent=66 // pred_region
        %s125 = sand.u32 1, 7
        %s126 = ssub.s32 1, %s125
        %s127 = scalar_lea.vmem %s98, %s126
        %s128 = ssub.s32 1, %s125
        %s129 = scalar_lea.vmem %s99, %s128 [#allocation2]
        %s130 = sshllo.u32 0, %s125
        loop: start=0, step=1, limit=1
        $region83: #{tpu_custom_call.1} parent=81 // loop_pre_header
          _
        $region84: #{tpu_custom_call.1} parent=81 // loop_header
          %s132 = sphi 0, %s136
          %p133 = scmp.ge.s32.totalorder %s132, 1
          %s137 = sphi %s127, %s127
          %s138 = sphi %s129, %s129
        $region85: #{tpu_custom_call.1} parent=81 // loop_header_branch
          %135 = sbr.rel (%p133) target = $region89
        $region86: #{tpu_custom_call.1} parent=81 // loop_body
          %v139 = vld [vmem:[%s137] sm:%s130]
          %140 = vst [vmem:[%s138] sm:%s130] %v139
        $region87: #{tpu_custom_call.1} parent=81 // loop_footer
          %s136 = sadd.s32 1, %s132
        $region88: #{tpu_custom_call.1} parent=81 // loop_footer_branch
          %131 = sbr.rel target = $region84
        $region89: #{tpu_custom_call.1} parent=81 // loop_exit
          _
      $region82: #{tpu_custom_call.1} parent=66 // pred_fallthru
        _
    $region67: #{tpu_custom_call.1} parent=1 // pred_fallthru
      _
    // Predicated region
    $region68: #{tpu_custom_call.1} parent=1 // pred_check
      %p106 = pneg %p102
    $region69: #{tpu_custom_call.1} parent=1 // pred_check_branch
      %108 = sbr.rel (%p106) target = $region71
    $region70: #{tpu_custom_call.1} parent=1 // pred_region
      %s109 = sshllo.u32 0, 1
      loop: start=0, step=1, limit=1
      $region72: #{tpu_custom_call.1} parent=70 // loop_pre_header
        _
      $region73: #{tpu_custom_call.1} parent=70 // loop_header
        %s111 = sphi 0, %s115
        %p112 = scmp.ge.s32.totalorder %s111, 1
        %s116 = sphi %s98, %s98
        %s117 = sphi %s99, %s99
      $region74: #{tpu_custom_call.1} parent=70 // loop_header_branch
        %114 = sbr.rel (%p112) target = $region78
      $region75: #{tpu_custom_call.1} parent=70 // loop_body
        %v118 = vld [vmem:[%s116] sm:%s109]
        %119 = vst [vmem:[%s117] sm:%s109] %v118
      $region76: #{tpu_custom_call.1} parent=70 // loop_footer
        %s115 = sadd.s32 1, %s111
      $region77: #{tpu_custom_call.1} parent=70 // loop_footer_branch
        %110 = sbr.rel target = $region73
      $region78: #{tpu_custom_call.1} parent=70 // loop_exit
        _
    $region71: #{tpu_custom_call.1} parent=1 // pred_fallthru
      _
    // Predicated region
    $region90: #{tpu_custom_call.1} parent=1 // pred_check
      _
    $region91: #{tpu_custom_call.1} parent=1 // pred_check_branch
      %143 = sbr.rel (0) target = $region93
    $region92: #{tpu_custom_call.1} parent=1 // pred_region
      %144 = vsyncadd %s100, 16
    $region93: #{tpu_custom_call.1} parent=1 // pred_fallthru
      _
    %s145 = sld [smem:[#allocation5 + $0x2]]
    %s146 = scalar_lea.vmem %s3, %s145
    %s147 = scalar_lea.vmem [#allocation2], 2
    %s148 = scalar_lea.sflag [#allocation3], 2
    %p150 = scmp.lt.u32.totalorder 1, 8
    %p151 = pneg %p150
    // Predicated region
    $region94: #{tpu_custom_call.1} parent=1 // pred_check
      _
    $region95: #{tpu_custom_call.1} parent=1 // pred_check_branch
      %153 = sbr.rel (%p150) target = $region97
    $region96: #{tpu_custom_call.1} parent=1 // pred_region
      %s168 = sand.u32 1, 7
      %p169 = scmp.eq.s32.totalorder %s168, 0
      %p170 = pneg %p169
      // Predicated region
      $region109: #{tpu_custom_call.1} parent=96 // pred_check
        _
      $region110: #{tpu_custom_call.1} parent=96 // pred_check_branch
        %172 = sbr.rel (%p169) target = $region112
      $region111: #{tpu_custom_call.1} parent=96 // pred_region
        %s173 = sand.u32 1, 7
        %s174 = ssub.s32 1, %s173
        %s175 = scalar_lea.vmem %s146, %s174
        %s176 = ssub.s32 1, %s173
        %s177 = scalar_lea.vmem %s147, %s176 [#allocation2]
        %s178 = sshllo.u32 0, %s173
        loop: start=0, step=1, limit=1
        $region113: #{tpu_custom_call.1} parent=111 // loop_pre_header
          _
        $region114: #{tpu_custom_call.1} parent=111 // loop_header
          %s180 = sphi 0, %s184
          %p181 = scmp.ge.s32.totalorder %s180, 1
          %s185 = sphi %s175, %s175
          %s186 = sphi %s177, %s177
        $region115: #{tpu_custom_call.1} parent=111 // loop_header_branch
          %183 = sbr.rel (%p181) target = $region119
        $region116: #{tpu_custom_call.1} parent=111 // loop_body
          %v187 = vld [vmem:[%s185] sm:%s178]
          %188 = vst [vmem:[%s186] sm:%s178] %v187
        $region117: #{tpu_custom_call.1} parent=111 // loop_footer
          %s184 = sadd.s32 1, %s180
        $region118: #{tpu_custom_call.1} parent=111 // loop_footer_branch
          %179 = sbr.rel target = $region114
        $region119: #{tpu_custom_call.1} parent=111 // loop_exit
          _
      $region112: #{tpu_custom_call.1} parent=96 // pred_fallthru
        _
    $region97: #{tpu_custom_call.1} parent=1 // pred_fallthru
      _
    // Predicated region
    $region98: #{tpu_custom_call.1} parent=1 // pred_check
      %p154 = pneg %p150
    $region99: #{tpu_custom_call.1} parent=1 // pred_check_branch
      %156 = sbr.rel (%p154) target = $region101
    $region100: #{tpu_custom_call.1} parent=1 // pred_region
      %s157 = sshllo.u32 0, 1
      loop: start=0, step=1, limit=1
      $region102: #{tpu_custom_call.1} parent=100 // loop_pre_header
        _
      $region103: #{tpu_custom_call.1} parent=100 // loop_header
        %s159 = sphi 0, %s163
        %p160 = scmp.ge.s32.totalorder %s159, 1
        %s164 = sphi %s146, %s146
        %s165 = sphi %s147, %s147
      $region104: #{tpu_custom_call.1} parent=100 // loop_header_branch
        %162 = sbr.rel (%p160) target = $region108
      $region105: #{tpu_custom_call.1} parent=100 // loop_body
        %v166 = vld [vmem:[%s164] sm:%s157]
        %167 = vst [vmem:[%s165] sm:%s157] %v166
      $region106: #{tpu_custom_call.1} parent=100 // loop_footer
        %s163 = sadd.s32 1, %s159
      $region107: #{tpu_custom_call.1} parent=100 // loop_footer_branch
        %158 = sbr.rel target = $region103
      $region108: #{tpu_custom_call.1} parent=100 // loop_exit
        _
    $region101: #{tpu_custom_call.1} parent=1 // pred_fallthru
      _
    // Predicated region
    $region120: #{tpu_custom_call.1} parent=1 // pred_check
      _
    $region121: #{tpu_custom_call.1} parent=1 // pred_check_branch
      %191 = sbr.rel (0) target = $region123
    $region122: #{tpu_custom_call.1} parent=1 // pred_region
      %192 = vsyncadd %s148, 16
    $region123: #{tpu_custom_call.1} parent=1 // pred_fallthru
      _
    %s193 = sld [smem:[#allocation5 + $0x3]]
    %s194 = scalar_lea.vmem %s3, %s193
    %s195 = scalar_lea.vmem [#allocation2], 3
    %s196 = scalar_lea.sflag [#allocation3], 3
    %p198 = scmp.lt.u32.totalorder 1, 8
    %p199 = pneg %p198
    // Predicated region
    $region124: #{tpu_custom_call.1} parent=1 // pred_check
      _
    $region125: #{tpu_custom_call.1} parent=1 // pred_check_branch
      %201 = sbr.rel (%p198) target = $region127
    $region126: #{tpu_custom_call.1} parent=1 // pred_region
      %s216 = sand.u32 1, 7
      %p217 = scmp.eq.s32.totalorder %s216, 0
      %p218 = pneg %p217
      // Predicated region
      $region139: #{tpu_custom_call.1} parent=126 // pred_check
        _
      $region140: #{tpu_custom_call.1} parent=126 // pred_check_branch
        %220 = sbr.rel (%p217) target = $region142
      $region141: #{tpu_custom_call.1} parent=126 // pred_region
        %s221 = sand.u32 1, 7
        %s222 = ssub.s32 1, %s221
        %s223 = scalar_lea.vmem %s194, %s222
        %s224 = ssub.s32 1, %s221
        %s225 = scalar_lea.vmem %s195, %s224 [#allocation2]
        %s226 = sshllo.u32 0, %s221
        loop: start=0, step=1, limit=1
        $region143: #{tpu_custom_call.1} parent=141 // loop_pre_header
          _
        $region144: #{tpu_custom_call.1} parent=141 // loop_header
          %s228 = sphi 0, %s232
          %p229 = scmp.ge.s32.totalorder %s228, 1
          %s233 = sphi %s223, %s223
          %s234 = sphi %s225, %s225
        $region145: #{tpu_custom_call.1} parent=141 // loop_header_branch
          %231 = sbr.rel (%p229) target = $region149
        $region146: #{tpu_custom_call.1} parent=141 // loop_body
          %v235 = vld [vmem:[%s233] sm:%s226]
          %236 = vst [vmem:[%s234] sm:%s226] %v235
        $region147: #{tpu_custom_call.1} parent=141 // loop_footer
          %s232 = sadd.s32 1, %s228
        $region148: #{tpu_custom_call.1} parent=141 // loop_footer_branch
          %227 = sbr.rel target = $region144
        $region149: #{tpu_custom_call.1} parent=141 // loop_exit
          _
      $region142: #{tpu_custom_call.1} parent=126 // pred_fallthru
        _
    $region127: #{tpu_custom_call.1} parent=1 // pred_fallthru
      _
    // Predicated region
    $region128: #{tpu_custom_call.1} parent=1 // pred_check
      %p202 = pneg %p198
    $region129: #{tpu_custom_call.1} parent=1 // pred_check_branch
      %204 = sbr.rel (%p202) target = $region131
    $region130: #{tpu_custom_call.1} parent=1 // pred_region
      %s205 = sshllo.u32 0, 1
      loop: start=0, step=1, limit=1
      $region132: #{tpu_custom_call.1} parent=130 // loop_pre_header
        _
      $region133: #{tpu_custom_call.1} parent=130 // loop_header
        %s207 = sphi 0, %s211
        %p208 = scmp.ge.s32.totalorder %s207, 1
        %s212 = sphi %s194, %s194
        %s213 = sphi %s195, %s195
      $region134: #{tpu_custom_call.1} parent=130 // loop_header_branch
        %210 = sbr.rel (%p208) target = $region138
      $region135: #{tpu_custom_call.1} parent=130 // loop_body
        %v214 = vld [vmem:[%s212] sm:%s205]
        %215 = vst [vmem:[%s213] sm:%s205] %v214
      $region136: #{tpu_custom_call.1} parent=130 // loop_footer
        %s211 = sadd.s32 1, %s207
      $region137: #{tpu_custom_call.1} parent=130 // loop_footer_branch
        %206 = sbr.rel target = $region133
      $region138: #{tpu_custom_call.1} parent=130 // loop_exit
        _
    $region131: #{tpu_custom_call.1} parent=1 // pred_fallthru
      _
    // Predicated region
    $region150: #{tpu_custom_call.1} parent=1 // pred_check
      _
    $region151: #{tpu_custom_call.1} parent=1 // pred_check_branch
      %239 = sbr.rel (0) target = $region153
    $region152: #{tpu_custom_call.1} parent=1 // pred_region
      %240 = vsyncadd %s196, 16
    $region153: #{tpu_custom_call.1} parent=1 // pred_fallthru
      _
    %s241 = sld [smem:[#allocation5 + $0x4]]
    %s242 = scalar_lea.vmem %s3, %s241
    %s243 = scalar_lea.vmem [#allocation2], 4
    %s244 = scalar_lea.sflag [#allocation3], 4
    %p246 = scmp.lt.u32.totalorder 1, 8
    %p247 = pneg %p246
    // Predicated region
    $region154: #{tpu_custom_call.1} parent=1 // pred_check
      _
    $region155: #{tpu_custom_call.1} parent=1 // pred_check_branch
      %249 = sbr.rel (%p246) target = $region157
    $region156: #{tpu_custom_call.1} parent=1 // pred_region
      %s264 = sand.u32 1, 7
      %p265 = scmp.eq.s32.totalorder %s264, 0
      %p266 = pneg %p265
      // Predicated region
      $region169: #{tpu_custom_call.1} parent=156 // pred_check
        _
      $region170: #{tpu_custom_call.1} parent=156 // pred_check_branch
        %268 = sbr.rel (%p265) target = $region172
      $region171: #{tpu_custom_call.1} parent=156 // pred_region
        %s269 = sand.u32 1, 7
        %s270 = ssub.s32 1, %s269
        %s271 = scalar_lea.vmem %s242, %s270
        %s272 = ssub.s32 1, %s269
        %s273 = scalar_lea.vmem %s243, %s272 [#allocation2]
        %s274 = sshllo.u32 0, %s269
        loop: start=0, step=1, limit=1
        $region173: #{tpu_custom_call.1} parent=171 // loop_pre_header
          _
        $region174: #{tpu_custom_call.1} parent=171 // loop_header
          %s276 = sphi 0, %s280
          %p277 = scmp.ge.s32.totalorder %s276, 1
          %s281 = sphi %s271, %s271
          %s282 = sphi %s273, %s273
        $region175: #{tpu_custom_call.1} parent=171 // loop_header_branch
          %279 = sbr.rel (%p277) target = $region179
        $region176: #{tpu_custom_call.1} parent=171 // loop_body
          %v283 = vld [vmem:[%s281] sm:%s274]
          %284 = vst [vmem:[%s282] sm:%s274] %v283
        $region177: #{tpu_custom_call.1} parent=171 // loop_footer
          %s280 = sadd.s32 1, %s276
        $region178: #{tpu_custom_call.1} parent=171 // loop_footer_branch
          %275 = sbr.rel target = $region174
        $region179: #{tpu_custom_call.1} parent=171 // loop_exit
          _
      $region172: #{tpu_custom_call.1} parent=156 // pred_fallthru
        _
    $region157: #{tpu_custom_call.1} parent=1 // pred_fallthru
      _
    // Predicated region
    $region158: #{tpu_custom_call.1} parent=1 // pred_check
      %p250 = pneg %p246
    $region159: #{tpu_custom_call.1} parent=1 // pred_check_branch
      %252 = sbr.rel (%p250) target = $region161
    $region160: #{tpu_custom_call.1} parent=1 // pred_region
      %s253 = sshllo.u32 0, 1
      loop: start=0, step=1, limit=1
      $region162: #{tpu_custom_call.1} parent=160 // loop_pre_header
        _
      $region163: #{tpu_custom_call.1} parent=160 // loop_header
        %s255 = sphi 0, %s259
        %p256 = scmp.ge.s32.totalorder %s255, 1
        %s260 = sphi %s242, %s242
        %s261 = sphi %s243, %s243
      $region164: #{tpu_custom_call.1} parent=160 // loop_header_branch
        %258 = sbr.rel (%p256) target = $region168
      $region165: #{tpu_custom_call.1} parent=160 // loop_body
        %v262 = vld [vmem:[%s260] sm:%s253]
        %263 = vst [vmem:[%s261] sm:%s253] %v262
      $region166: #{tpu_custom_call.1} parent=160 // loop_footer
        %s259 = sadd.s32 1, %s255
      $region167: #{tpu_custom_call.1} parent=160 // loop_footer_branch
        %254 = sbr.rel target = $region163
      $region168: #{tpu_custom_call.1} parent=160 // loop_exit
        _
    $region161: #{tpu_custom_call.1} parent=1 // pred_fallthru
      _
    // Predicated region
    $region180: #{tpu_custom_call.1} parent=1 // pred_check
      _
    $region181: #{tpu_custom_call.1} parent=1 // pred_check_branch
      %287 = sbr.rel (0) target = $region183
    $region182: #{tpu_custom_call.1} parent=1 // pred_region
      %288 = vsyncadd %s244, 16
    $region183: #{tpu_custom_call.1} parent=1 // pred_fallthru
      _
    %s289 = sld [smem:[#allocation5 + $0x5]]
    %s290 = scalar_lea.vmem %s3, %s289
    %s291 = scalar_lea.vmem [#allocation2], 5
    %s292 = scalar_lea.sflag [#allocation3], 5
    %p294 = scmp.lt.u32.totalorder 1, 8
    %p295 = pneg %p294
    // Predicated region
    $region184: #{tpu_custom_call.1} parent=1 // pred_check
      _
    $region185: #{tpu_custom_call.1} parent=1 // pred_check_branch
      %297 = sbr.rel (%p294) target = $region187
    $region186: #{tpu_custom_call.1} parent=1 // pred_region
      %s312 = sand.u32 1, 7
      %p313 = scmp.eq.s32.totalorder %s312, 0
      %p314 = pneg %p313
      // Predicated region
      $region199: #{tpu_custom_call.1} parent=186 // pred_check
        _
      $region200: #{tpu_custom_call.1} parent=186 // pred_check_branch
        %316 = sbr.rel (%p313) target = $region202
      $region201: #{tpu_custom_call.1} parent=186 // pred_region
        %s317 = sand.u32 1, 7
        %s318 = ssub.s32 1, %s317
        %s319 = scalar_lea.vmem %s290, %s318
        %s320 = ssub.s32 1, %s317
        %s321 = scalar_lea.vmem %s291, %s320 [#allocation2]
        %s322 = sshllo.u32 0, %s317
        loop: start=0, step=1, limit=1
        $region203: #{tpu_custom_call.1} parent=201 // loop_pre_header
          _
        $region204: #{tpu_custom_call.1} parent=201 // loop_header
          %s324 = sphi 0, %s328
          %p325 = scmp.ge.s32.totalorder %s324, 1
          %s329 = sphi %s319, %s319
          %s330 = sphi %s321, %s321
        $region205: #{tpu_custom_call.1} parent=201 // loop_header_branch
          %327 = sbr.rel (%p325) target = $region209
        $region206: #{tpu_custom_call.1} parent=201 // loop_body
          %v331 = vld [vmem:[%s329] sm:%s322]
          %332 = vst [vmem:[%s330] sm:%s322] %v331
        $region207: #{tpu_custom_call.1} parent=201 // loop_footer
          %s328 = sadd.s32 1, %s324
        $region208: #{tpu_custom_call.1} parent=201 // loop_footer_branch
          %323 = sbr.rel target = $region204
        $region209: #{tpu_custom_call.1} parent=201 // loop_exit
          _
      $region202: #{tpu_custom_call.1} parent=186 // pred_fallthru
        _
    $region187: #{tpu_custom_call.1} parent=1 // pred_fallthru
      _
    // Predicated region
    $region188: #{tpu_custom_call.1} parent=1 // pred_check
      %p298 = pneg %p294
    $region189: #{tpu_custom_call.1} parent=1 // pred_check_branch
      %300 = sbr.rel (%p298) target = $region191
    $region190: #{tpu_custom_call.1} parent=1 // pred_region
      %s301 = sshllo.u32 0, 1
      loop: start=0, step=1, limit=1
      $region192: #{tpu_custom_call.1} parent=190 // loop_pre_header
        _
      $region193: #{tpu_custom_call.1} parent=190 // loop_header
        %s303 = sphi 0, %s307
        %p304 = scmp.ge.s32.totalorder %s303, 1
        %s308 = sphi %s290, %s290
        %s309 = sphi %s291, %s291
      $region194: #{tpu_custom_call.1} parent=190 // loop_header_branch
        %306 = sbr.rel (%p304) target = $region198
      $region195: #{tpu_custom_call.1} parent=190 // loop_body
        %v310 = vld [vmem:[%s308] sm:%s301]
        %311 = vst [vmem:[%s309] sm:%s301] %v310
      $region196: #{tpu_custom_call.1} parent=190 // loop_footer
        %s307 = sadd.s32 1, %s303
      $region197: #{tpu_custom_call.1} parent=190 // loop_footer_branch
        %302 = sbr.rel target = $region193
      $region198: #{tpu_custom_call.1} parent=190 // loop_exit
        _
    $region191: #{tpu_custom_call.1} parent=1 // pred_fallthru
      _
    // Predicated region
    $region210: #{tpu_custom_call.1} parent=1 // pred_check
      _
    $region211: #{tpu_custom_call.1} parent=1 // pred_check_branch
      %335 = sbr.rel (0) target = $region213
    $region212: #{tpu_custom_call.1} parent=1 // pred_region
      %336 = vsyncadd %s292, 16
    $region213: #{tpu_custom_call.1} parent=1 // pred_fallthru
      _
    %s337 = sld [smem:[#allocation5 + $0x6]]
    %s338 = scalar_lea.vmem %s3, %s337
    %s339 = scalar_lea.vmem [#allocation2], 6
    %s340 = scalar_lea.sflag [#allocation3], 6
    %p342 = scmp.lt.u32.totalorder 1, 8
    %p343 = pneg %p342
    // Predicated region
    $region214: #{tpu_custom_call.1} parent=1 // pred_check
      _
    $region215: #{tpu_custom_call.1} parent=1 // pred_check_branch
      %345 = sbr.rel (%p342) target = $region217
    $region216: #{tpu_custom_call.1} parent=1 // pred_region
      %s360 = sand.u32 1, 7
      %p361 = scmp.eq.s32.totalorder %s360, 0
      %p362 = pneg %p361
      // Predicated region
      $region229: #{tpu_custom_call.1} parent=216 // pred_check
        _
      $region230: #{tpu_custom_call.1} parent=216 // pred_check_branch
        %364 = sbr.rel (%p361) target = $region232
      $region231: #{tpu_custom_call.1} parent=216 // pred_region
        %s365 = sand.u32 1, 7
        %s366 = ssub.s32 1, %s365
        %s367 = scalar_lea.vmem %s338, %s366
        %s368 = ssub.s32 1, %s365
        %s369 = scalar_lea.vmem %s339, %s368 [#allocation2]
        %s370 = sshllo.u32 0, %s365
        loop: start=0, step=1, limit=1
        $region233: #{tpu_custom_call.1} parent=231 // loop_pre_header
          _
        $region234: #{tpu_custom_call.1} parent=231 // loop_header
          %s372 = sphi 0, %s376
          %p373 = scmp.ge.s32.totalorder %s372, 1
          %s377 = sphi %s367, %s367
          %s378 = sphi %s369, %s369
        $region235: #{tpu_custom_call.1} parent=231 // loop_header_branch
          %375 = sbr.rel (%p373) target = $region239
        $region236: #{tpu_custom_call.1} parent=231 // loop_body
          %v379 = vld [vmem:[%s377] sm:%s370]
          %380 = vst [vmem:[%s378] sm:%s370] %v379
        $region237: #{tpu_custom_call.1} parent=231 // loop_footer
          %s376 = sadd.s32 1, %s372
        $region238: #{tpu_custom_call.1} parent=231 // loop_footer_branch
          %371 = sbr.rel target = $region234
        $region239: #{tpu_custom_call.1} parent=231 // loop_exit
          _
      $region232: #{tpu_custom_call.1} parent=216 // pred_fallthru
        _
    $region217: #{tpu_custom_call.1} parent=1 // pred_fallthru
      _
    // Predicated region
    $region218: #{tpu_custom_call.1} parent=1 // pred_check
      %p346 = pneg %p342
    $region219: #{tpu_custom_call.1} parent=1 // pred_check_branch
      %348 = sbr.rel (%p346) target = $region221
    $region220: #{tpu_custom_call.1} parent=1 // pred_region
      %s349 = sshllo.u32 0, 1
      loop: start=0, step=1, limit=1
      $region222: #{tpu_custom_call.1} parent=220 // loop_pre_header
        _
      $region223: #{tpu_custom_call.1} parent=220 // loop_header
        %s351 = sphi 0, %s355
        %p352 = scmp.ge.s32.totalorder %s351, 1
        %s356 = sphi %s338, %s338
        %s357 = sphi %s339, %s339
      $region224: #{tpu_custom_call.1} parent=220 // loop_header_branch
        %354 = sbr.rel (%p352) target = $region228
      $region225: #{tpu_custom_call.1} parent=220 // loop_body
        %v358 = vld [vmem:[%s356] sm:%s349]
        %359 = vst [vmem:[%s357] sm:%s349] %v358
      $region226: #{tpu_custom_call.1} parent=220 // loop_footer
        %s355 = sadd.s32 1, %s351
      $region227: #{tpu_custom_call.1} parent=220 // loop_footer_branch
        %350 = sbr.rel target = $region223
      $region228: #{tpu_custom_call.1} parent=220 // loop_exit
        _
    $region221: #{tpu_custom_call.1} parent=1 // pred_fallthru
      _
    // Predicated region
    $region240: #{tpu_custom_call.1} parent=1 // pred_check
      _
    $region241: #{tpu_custom_call.1} parent=1 // pred_check_branch
      %383 = sbr.rel (0) target = $region243
    $region242: #{tpu_custom_call.1} parent=1 // pred_region
      %384 = vsyncadd %s340, 16
    $region243: #{tpu_custom_call.1} parent=1 // pred_fallthru
      _
    %s385 = sld [smem:[#allocation5 + $0x7]]
    %s386 = scalar_lea.vmem %s3, %s385
    %s387 = scalar_lea.vmem [#allocation2], 7
    %s388 = scalar_lea.sflag [#allocation3], 7
    %p390 = scmp.lt.u32.totalorder 1, 8
    %p391 = pneg %p390
    // Predicated region
    $region244: #{tpu_custom_call.1} parent=1 // pred_check
      _
    $region245: #{tpu_custom_call.1} parent=1 // pred_check_branch
      %393 = sbr.rel (%p390) target = $region247
    $region246: #{tpu_custom_call.1} parent=1 // pred_region
      %s408 = sand.u32 1, 7
      %p409 = scmp.eq.s32.totalorder %s408, 0
      %p410 = pneg %p409
      // Predicated region
      $region259: #{tpu_custom_call.1} parent=246 // pred_check
        _
      $region260: #{tpu_custom_call.1} parent=246 // pred_check_branch
        %412 = sbr.rel (%p409) target = $region262
      $region261: #{tpu_custom_call.1} parent=246 // pred_region
        %s413 = sand.u32 1, 7
        %s414 = ssub.s32 1, %s413
        %s415 = scalar_lea.vmem %s386, %s414
        %s416 = ssub.s32 1, %s413
        %s417 = scalar_lea.vmem %s387, %s416 [#allocation2]
        %s418 = sshllo.u32 0, %s413
        loop: start=0, step=1, limit=1
        $region263: #{tpu_custom_call.1} parent=261 // loop_pre_header
          _
        $region264: #{tpu_custom_call.1} parent=261 // loop_header
          %s420 = sphi 0, %s424
          %p421 = scmp.ge.s32.totalorder %s420, 1
          %s425 = sphi %s415, %s415
          %s426 = sphi %s417, %s417
        $region265: #{tpu_custom_call.1} parent=261 // loop_header_branch
          %423 = sbr.rel (%p421) target = $region269
        $region266: #{tpu_custom_call.1} parent=261 // loop_body
          %v427 = vld [vmem:[%s425] sm:%s418]
          %428 = vst [vmem:[%s426] sm:%s418] %v427
        $region267: #{tpu_custom_call.1} parent=261 // loop_footer
          %s424 = sadd.s32 1, %s420
        $region268: #{tpu_custom_call.1} parent=261 // loop_footer_branch
          %419 = sbr.rel target = $region264
        $region269: #{tpu_custom_call.1} parent=261 // loop_exit
          _
      $region262: #{tpu_custom_call.1} parent=246 // pred_fallthru
        _
    $region247: #{tpu_custom_call.1} parent=1 // pred_fallthru
      _
    // Predicated region
    $region248: #{tpu_custom_call.1} parent=1 // pred_check
      %p394 = pneg %p390
    $region249: #{tpu_custom_call.1} parent=1 // pred_check_branch
      %396 = sbr.rel (%p394) target = $region251
    $region250: #{tpu_custom_call.1} parent=1 // pred_region
      %s397 = sshllo.u32 0, 1
      loop: start=0, step=1, limit=1
      $region252: #{tpu_custom_call.1} parent=250 // loop_pre_header
        _
      $region253: #{tpu_custom_call.1} parent=250 // loop_header
        %s399 = sphi 0, %s403
        %p400 = scmp.ge.s32.totalorder %s399, 1
        %s404 = sphi %s386, %s386
        %s405 = sphi %s387, %s387
      $region254: #{tpu_custom_call.1} parent=250 // loop_header_branch
        %402 = sbr.rel (%p400) target = $region258
      $region255: #{tpu_custom_call.1} parent=250 // loop_body
        %v406 = vld [vmem:[%s404] sm:%s397]
        %407 = vst [vmem:[%s405] sm:%s397] %v406
      $region256: #{tpu_custom_call.1} parent=250 // loop_footer
        %s403 = sadd.s32 1, %s399
      $region257: #{tpu_custom_call.1} parent=250 // loop_footer_branch
        %398 = sbr.rel target = $region253
      $region258: #{tpu_custom_call.1} parent=250 // loop_exit
        _
    $region251: #{tpu_custom_call.1} parent=1 // pred_fallthru
      _
    // Predicated region
    $region270: #{tpu_custom_call.1} parent=1 // pred_check
      _
    $region271: #{tpu_custom_call.1} parent=1 // pred_check_branch
      %431 = sbr.rel (0) target = $region273
    $region272: #{tpu_custom_call.1} parent=1 // pred_region
      %432 = vsyncadd %s388, 16
    $region273: #{tpu_custom_call.1} parent=1 // pred_fallthru
      _
    %s433 = smul.u32 1, 1
    %s434 = sshll.u32 %s433, 4
    %435 = dma.done [#allocation3], %s434
    %s436 = sshll.u32 %s433, 4
    %437 = dma.done %s100, %s436
    %s438 = sshll.u32 %s433, 4
    %439 = dma.done %s148, %s438
    %s440 = sshll.u32 %s433, 4
    %441 = dma.done %s196, %s440
    %s442 = sshll.u32 %s433, 4
    %443 = dma.done %s244, %s442
    %s444 = sshll.u32 %s433, 4
    %445 = dma.done %s292, %s444
    %s446 = sshll.u32 %s433, 4
    %447 = dma.done %s340, %s446
    %s448 = sshll.u32 %s433, 4
    %449 = dma.done %s388, %s448
    %v450 = vld [vmem:[#allocation2] sm:$0xff]
    %v451 = vld [vmem:[%s4] sm:$0xff]
    %v452 = vld [vmem:[%s4 + $0x8] sm:$0xff]
    %v453 = vld [vmem:[%s6] sm:$0x1]
    %v455 = vlaneseq
    %v456 = vshrl.u32 %v455, 7
    %v457 = vsub.s32 0, %v456
    %v458 = vrot.slane %v453, %v457
    %vm460 = vcmask 130048
    %v462 = vsel %vm460, %v450, 0
    %464 = vmatprep.subr.mxu0 0.0
    %465 = vmatpush1.msra.mxu0 %v451
    %466 = vmatprep.subr.mxu0 0.0
    %467 = vmatpush1.msra.mxu0 %v452
    %468 = vmatprep.subr.mxu0 0.0
    %469 = vmatpush1.msra.mxu0 0.0
    %470 = vmatprep.subr.mxu0 0.0
    %471 = vmatpush1.msra.mxu0 0.0
    %472 = vmatprep.subr.mxu0 0.0
    %473 = vmatpush1.msra.mxu0 0.0
    %474 = vmatprep.subr.mxu0 0.0
    %475 = vmatpush1.msra.mxu0 0.0
    %476 = vmatprep.subr.mxu0 0.0
    %477 = vmatpush1.msra.mxu0 0.0
    %478 = vmatprep.subr.mxu0 0.0
    %479 = vmatpush1.msra.mxu0 0.0
    %480 = vmatprep.subr.mxu0 0.0
    %481 = vmatpush1.msra.mxu0 0.0
    %482 = vmatprep.subr.mxu0 0.0
    %483 = vmatpush1.msra.mxu0 0.0
    %484 = vmatprep.subr.mxu0 0.0
    %485 = vmatpush1.msra.mxu0 0.0
    %486 = vmatprep.subr.mxu0 0.0
    %487 = vmatpush1.msra.mxu0 0.0
    %488 = vmatprep.subr.mxu0 0.0
    %489 = vmatpush1.msra.mxu0 0.0
    %490 = vmatprep.subr.mxu0 0.0
    %491 = vmatpush1.msra.mxu0 0.0
    %492 = vmatprep.subr.mxu0 0.0
    %493 = vmatpush1.msra.mxu0 0.0
    %494 = vmatprep.subr.mxu0 0.0
    %495 = vmatpush1.msra.mxu0 0.0
    %496 = vmatprep.subr.mxu0 0.0
    %497 = vmatpush1.msra.mxu0 0.0
    %498 = vmatprep.subr.mxu0 0.0
    %499 = vmatpush1.msra.mxu0 0.0
    %500 = vmatprep.subr.mxu0 0.0
    %501 = vmatpush1.msra.mxu0 0.0
    %502 = vmatprep.subr.mxu0 0.0
    %503 = vmatpush1.msra.mxu0 0.0
    %504 = vmatprep.subr.mxu0 0.0
    %505 = vmatpush1.msra.mxu0 0.0
    %506 = vmatprep.subr.mxu0 0.0
    %507 = vmatpush1.msra.mxu0 0.0
    %508 = vmatprep.subr.mxu0 0.0
    %509 = vmatpush1.msra.mxu0 0.0
    %510 = vmatprep.subr.mxu0 0.0
    %511 = vmatpush1.msra.mxu0 0.0
    %512 = vmatprep.subr.mxu0 0.0
    %513 = vmatpush1.msra.mxu0 0.0
    %514 = vmatprep.subr.mxu0 0.0
    %515 = vmatpush1.msra.mxu0 0.0
    %516 = vmatprep.subr.mxu0 0.0
    %517 = vmatpush1.msra.mxu0 0.0
    %518 = vmatprep.subr.mxu0 0.0
    %519 = vmatpush1.msra.mxu0 0.0
    %520 = vmatprep.subr.mxu0 0.0
    %521 = vmatpush1.msra.mxu0 0.0
    %522 = vmatprep.subr.mxu0 0.0
    %523 = vmatpush1.msra.mxu0 0.0
    %524 = vmatprep.subr.mxu0 0.0
    %525 = vmatpush1.msra.mxu0 0.0
    %526 = vmatprep.subr.mxu0 0.0
    %527 = vmatpush1.msra.mxu0 0.0
    %528 = vmatprep.mubr.f32.mxu0 0.0
    %529 = vmatmul.mubr.f32.gmra.mrb[0].mxu0 %v462
    %v530 = vpop.f32.mrb[0].mxu0
    %v531 = vadd.f32 %v458, %v530
    %v532 = vpop.f32.mrb[0].mxu0
    %533 = vdwg.mxu0
    %v534 = vld [vmem:[%s5] sm:$0xff]
    %v535 = vld [vmem:[%s5 + $0x8] sm:$0xff]
    %v536 = vld [vmem:[%s5 + $0x10] sm:$0xff]
    %v537 = vld [vmem:[%s5 + $0x18] sm:$0xff]
    %v538 = vlaneseq
    %v539 = vand.u32 %v538, 127
    %vm540 = vcmp.ge.s32.totalorder %v539, 64
    %vm541 = vcmp.lt.s32.totalorder %v539, 96
    %vm542 = vmand %vm540, %vm541
    %v543 = vsel %vm542, 1.0, 0.5
    %v544 = vsel %vm542, 0.0, 0.5
    %vm545 = vcmask 261120
    %v547 = vsel %vm545, 0.0, 0
    %549 = vmatprep.subr.mxu0 0.0
    %550 = vmatpush1.msra.mxu0 %v534
    %551 = vmatprep.subr.mxu0 0.0
    %552 = vmatpush1.msra.mxu0 %v535
    %553 = vmatprep.subr.mxu0 0.0
    %554 = vmatpush1.msra.mxu0 %v536
    %555 = vmatprep.subr.mxu0 0.0
    %556 = vmatpush1.msra.mxu0 %v537
    %557 = vmatprep.subr.mxu0 0.0
    %558 = vmatpush1.msra.mxu0 0.0
    %559 = vmatprep.subr.mxu0 0.0
    %560 = vmatpush1.msra.mxu0 0.0
    %561 = vmatprep.subr.mxu0 0.0
    %562 = vmatpush1.msra.mxu0 0.0
    %563 = vmatprep.subr.mxu0 0.0
    %564 = vmatpush1.msra.mxu0 0.0
    %565 = vmatprep.subr.mxu0 0.0
    %566 = vmatpush1.msra.mxu0 0.0
    %567 = vmatprep.subr.mxu0 0.0
    %568 = vmatpush1.msra.mxu0 0.0
    %569 = vmatprep.subr.mxu0 0.0
    %570 = vmatpush1.msra.mxu0 0.0
    %571 = vmatprep.subr.mxu0 0.0
    %572 = vmatpush1.msra.mxu0 0.0
    %573 = vmatprep.subr.mxu0 0.0
    %574 = vmatpush1.msra.mxu0 0.0
    %575 = vmatprep.subr.mxu0 0.0
    %576 = vmatpush1.msra.mxu0 0.0
    %577 = vmatprep.subr.mxu0 0.0
    %578 = vmatpush1.msra.mxu0 0.0
    %579 = vmatprep.subr.mxu0 0.0
    %580 = vmatpush1.msra.mxu0 0.0
    %581 = vmatprep.subr.mxu0 0.0
    %582 = vmatpush1.msra.mxu0 0.0
    %583 = vmatprep.subr.mxu0 0.0
    %584 = vmatpush1.msra.mxu0 0.0
    %585 = vmatprep.subr.mxu0 0.0
    %586 = vmatpush1.msra.mxu0 0.0
    %587 = vmatprep.subr.mxu0 0.0
    %588 = vmatpush1.msra.mxu0 0.0
    %589 = vmatprep.subr.mxu0 0.0
    %590 = vmatpush1.msra.mxu0 0.0
    %591 = vmatprep.subr.mxu0 0.0
    %592 = vmatpush1.msra.mxu0 0.0
    %593 = vmatprep.subr.mxu0 0.0
    %594 = vmatpush1.msra.mxu0 0.0
    %595 = vmatprep.subr.mxu0 0.0
    %596 = vmatpush1.msra.mxu0 0.0
    %597 = vmatprep.subr.mxu0 0.0
    %598 = vmatpush1.msra.mxu0 0.0
    %599 = vmatprep.subr.mxu0 0.0
    %600 = vmatpush1.msra.mxu0 0.0
    %601 = vmatprep.subr.mxu0 0.0
    %602 = vmatpush1.msra.mxu0 0.0
    %603 = vmatprep.subr.mxu0 0.0
    %604 = vmatpush1.msra.mxu0 0.0
    %605 = vmatprep.subr.mxu0 0.0
    %606 = vmatpush1.msra.mxu0 0.0
    %607 = vmatprep.subr.mxu0 0.0
    %608 = vmatpush1.msra.mxu0 0.0
    %609 = vmatprep.subr.mxu0 0.0
    %610 = vmatpush1.msra.mxu0 0.0
    %611 = vmatprep.subr.mxu0 0.0
    %612 = vmatpush1.msra.mxu0 0.0
    %613 = vmatprep.mubr.f32.mxu0 0.0
    %614 = vmatmul.mubr.f32.gmra.mrb[0].mxu0 %v547
    %v615 = vpop.f32.mrb[0].mxu0
    %v616 = vadd.f32 0.0, %v615
    %v617 = vpop.f32.mrb[0].mxu0
    %618 = vdwg.mxu0
    %v619 = vadd.f32 %v531, %v616
    %v620 = vmul.f32 %v619, %v543
    %v621 = vtanh.pop %v620
    %v622 = vmul.f32 %v621, %v543
    %v623 = vadd.f32 %v622, %v544
    %v624 = vmul.f32 %v623, 0.0
    %626 = vrot.lane.b32.xlu0 %v623, 64
    %v627 = vpop.permute.xlu0 %626
    %v629 = vmul.f32 %v623, %v627
    %631 = vrot.lane.b32.xlu0 %v629, 32
    %v632 = vpop.permute.xlu0 %631
    %v634 = vadd.f32 %v624, %v632
    %v635 = vtanh.pop %v634
    %637 = vrot.lane.b32.xlu0 %v635, 64
    %v638 = vpop.permute.xlu0 %637
    %v640 = vmul.f32 %v623, %v638
    %s641 = sld [smem:[#allocation8]]
    %v642 = vstv %s641
    %v643 = vmul.f32 %v642, %v640
    %v644 = vadd.f32 %v643, 0.0
    %646 = vrot.lane.b32.xlu0 %v640, 32
    %v647 = vpop.permute.xlu0 %646
    %v648 = vsel %vm545, %v647, 0
    %650 = vmatprep.subr.mxu0 0.0
    %651 = vmatpush1.msra.mxu0 %v534
    %652 = vmatprep.subr.mxu0 0.0
    %653 = vmatpush1.msra.mxu0 %v535
    %654 = vmatprep.subr.mxu0 0.0
    %655 = vmatpush1.msra.mxu0 %v536
    %656 = vmatprep.subr.mxu0 0.0
    %657 = vmatpush1.msra.mxu0 %v537
    %658 = vmatprep.subr.mxu0 0.0
    %659 = vmatpush1.msra.mxu0 0.0
    %660 = vmatprep.subr.mxu0 0.0
    %661 = vmatpush1.msra.mxu0 0.0
    %662 = vmatprep.subr.mxu0 0.0
    %663 = vmatpush1.msra.mxu0 0.0
    %664 = vmatprep.subr.mxu0 0.0
    %665 = vmatpush1.msra.mxu0 0.0
    %666 = vmatprep.subr.mxu0 0.0
    %667 = vmatpush1.msra.mxu0 0.0
    %668 = vmatprep.subr.mxu0 0.0
    %669 = vmatpush1.msra.mxu0 0.0
    %670 = vmatprep.subr.mxu0 0.0
    %671 = vmatpush1.msra.mxu0 0.0
    %672 = vmatprep.subr.mxu0 0.0
    %673 = vmatpush1.msra.mxu0 0.0
    %674 = vmatprep.subr.mxu0 0.0
    %675 = vmatpush1.msra.mxu0 0.0
    %676 = vmatprep.subr.mxu0 0.0
    %677 = vmatpush1.msra.mxu0 0.0
    %678 = vmatprep.subr.mxu0 0.0
    %679 = vmatpush1.msra.mxu0 0.0
    %680 = vmatprep.subr.mxu0 0.0
    %681 = vmatpush1.msra.mxu0 0.0
    %682 = vmatprep.subr.mxu0 0.0
    %683 = vmatpush1.msra.mxu0 0.0
    %684 = vmatprep.subr.mxu0 0.0
    %685 = vmatpush1.msra.mxu0 0.0
    %686 = vmatprep.subr.mxu0 0.0
    %687 = vmatpush1.msra.mxu0 0.0
    %688 = vmatprep.subr.mxu0 0.0
    %689 = vmatpush1.msra.mxu0 0.0
    %690 = vmatprep.subr.mxu0 0.0
    %691 = vmatpush1.msra.mxu0 0.0
    %692 = vmatprep.subr.mxu0 0.0
    %693 = vmatpush1.msra.mxu0 0.0
    %694 = vmatprep.subr.mxu0 0.0
    %695 = vmatpush1.msra.mxu0 0.0
    %696 = vmatprep.subr.mxu0 0.0
    %697 = vmatpush1.msra.mxu0 0.0
    %698 = vmatprep.subr.mxu0 0.0
    %699 = vmatpush1.msra.mxu0 0.0
    %700 = vmatprep.subr.mxu0 0.0
    %701 = vmatpush1.msra.mxu0 0.0
    %702 = vmatprep.subr.mxu0 0.0
    %703 = vmatpush1.msra.mxu0 0.0
    %704 = vmatprep.subr.mxu0 0.0
    %705 = vmatpush1.msra.mxu0 0.0
    %706 = vmatprep.subr.mxu0 0.0
    %707 = vmatpush1.msra.mxu0 0.0
    %708 = vmatprep.subr.mxu0 0.0
    %709 = vmatpush1.msra.mxu0 0.0
    %710 = vmatprep.subr.mxu0 0.0
    %711 = vmatpush1.msra.mxu0 0.0
    %712 = vmatprep.subr.mxu0 0.0
    %713 = vmatpush1.msra.mxu0 0.0
    %714 = vmatprep.mubr.f32.mxu0 0.0
    %715 = vmatmul.mubr.f32.gmra.mrb[0].mxu0 %v648
    %v716 = vpop.f32.mrb[0].mxu0
    %v717 = vadd.f32 0.0, %v716
    %v718 = vpop.f32.mrb[0].mxu0
    %719 = vdwg.mxu0
    %v721 = vrot.slane %v717, 7
    %v723 = vadd.f32 %v531, %v721
    %v724 = vmul.f32 %v723, %v543
    %v725 = vtanh.pop %v724
    %v726 = vmul.f32 %v725, %v543
    %v727 = vadd.f32 %v726, %v544
    %v729 = vrot.slane %v634, 7
    %v731 = vmul.f32 %v727, %v729
    %733 = vrot.lane.b32.xlu0 %v727, 64
    %v734 = vpop.permute.xlu0 %733
    %v736 = vmul.f32 %v727, %v734
    %738 = vrot.lane.b32.xlu0 %v736, 32
    %v739 = vpop.permute.xlu0 %738
    %v741 = vadd.f32 %v731, %v739
    %v742 = vtanh.pop %v741
    %744 = vrot.lane.b32.xlu0 %v742, 64
    %v745 = vpop.permute.xlu0 %744
    %v747 = vmul.f32 %v727, %v745
    %s748 = sld [smem:[#allocation8 + $0x1]]
    %v749 = vstv %s748
    %v750 = vmul.f32 %v749, %v747
    %v752 = vrot.slane %v750, 1
    %v754 = vadd.f32 %v644, %v752
    %v756 = vrot.slane %v747, 1
    %757 = vrot.lane.b32.xlu0 %v756, 32
    %v758 = vpop.permute.xlu0 %757
    %v759 = vsel %vm545, %v758, 0
    %761 = vmatprep.subr.mxu0 0.0
    %762 = vmatpush1.msra.mxu0 %v534
    %763 = vmatprep.subr.mxu0 0.0
    %764 = vmatpush1.msra.mxu0 %v535
    %765 = vmatprep.subr.mxu0 0.0
    %766 = vmatpush1.msra.mxu0 %v536
    %767 = vmatprep.subr.mxu0 0.0
    %768 = vmatpush1.msra.mxu0 %v537
    %769 = vmatprep.subr.mxu0 0.0
    %770 = vmatpush1.msra.mxu0 0.0
    %771 = vmatprep.subr.mxu0 0.0
    %772 = vmatpush1.msra.mxu0 0.0
    %773 = vmatprep.subr.mxu0 0.0
    %774 = vmatpush1.msra.mxu0 0.0
    %775 = vmatprep.subr.mxu0 0.0
    %776 = vmatpush1.msra.mxu0 0.0
    %777 = vmatprep.subr.mxu0 0.0
    %778 = vmatpush1.msra.mxu0 0.0
    %779 = vmatprep.subr.mxu0 0.0
    %780 = vmatpush1.msra.mxu0 0.0
    %781 = vmatprep.subr.mxu0 0.0
    %782 = vmatpush1.msra.mxu0 0.0
    %783 = vmatprep.subr.mxu0 0.0
    %784 = vmatpush1.msra.mxu0 0.0
    %785 = vmatprep.subr.mxu0 0.0
    %786 = vmatpush1.msra.mxu0 0.0
    %787 = vmatprep.subr.mxu0 0.0
    %788 = vmatpush1.msra.mxu0 0.0
    %789 = vmatprep.subr.mxu0 0.0
    %790 = vmatpush1.msra.mxu0 0.0
    %791 = vmatprep.subr.mxu0 0.0
    %792 = vmatpush1.msra.mxu0 0.0
    %793 = vmatprep.subr.mxu0 0.0
    %794 = vmatpush1.msra.mxu0 0.0
    %795 = vmatprep.subr.mxu0 0.0
    %796 = vmatpush1.msra.mxu0 0.0
    %797 = vmatprep.subr.mxu0 0.0
    %798 = vmatpush1.msra.mxu0 0.0
    %799 = vmatprep.subr.mxu0 0.0
    %800 = vmatpush1.msra.mxu0 0.0
    %801 = vmatprep.subr.mxu0 0.0
    %802 = vmatpush1.msra.mxu0 0.0
    %803 = vmatprep.subr.mxu0 0.0
    %804 = vmatpush1.msra.mxu0 0.0
    %805 = vmatprep.subr.mxu0 0.0
    %806 = vmatpush1.msra.mxu0 0.0
    %807 = vmatprep.subr.mxu0 0.0
    %808 = vmatpush1.msra.mxu0 0.0
    %809 = vmatprep.subr.mxu0 0.0
    %810 = vmatpush1.msra.mxu0 0.0
    %811 = vmatprep.subr.mxu0 0.0
    %812 = vmatpush1.msra.mxu0 0.0
    %813 = vmatprep.subr.mxu0 0.0
    %814 = vmatpush1.msra.mxu0 0.0
    %815 = vmatprep.subr.mxu0 0.0
    %816 = vmatpush1.msra.mxu0 0.0
    %817 = vmatprep.subr.mxu0 0.0
    %818 = vmatpush1.msra.mxu0 0.0
    %819 = vmatprep.subr.mxu0 0.0
    %820 = vmatpush1.msra.mxu0 0.0
    %821 = vmatprep.subr.mxu0 0.0
    %822 = vmatpush1.msra.mxu0 0.0
    %823 = vmatprep.subr.mxu0 0.0
    %824 = vmatpush1.msra.mxu0 0.0
    %825 = vmatprep.mubr.f32.mxu0 0.0
    %826 = vmatmul.mubr.f32.gmra.mrb[0].mxu0 %v759
    %v827 = vpop.f32.mrb[0].mxu0
    %v828 = vadd.f32 0.0, %v827
    %v829 = vpop.f32.mrb[0].mxu0
    %830 = vdwg.mxu0
    %v832 = vrot.slane %v828, 6
    %v834 = vadd.f32 %v531, %v832
    %v835 = vmul.f32 %v834, %v543
    %v836 = vtanh.pop %v835
    %v837 = vmul.f32 %v836, %v543
    %v838 = vadd.f32 %v837, %v544
    %v840 = vrot.slane %v741, 7
    %v842 = vmul.f32 %v838, %v840
    %844 = vrot.lane.b32.xlu0 %v838, 64
    %v845 = vpop.permute.xlu0 %844
    %v847 = vmul.f32 %v838, %v845
    %849 = vrot.lane.b32.xlu0 %v847, 32
    %v850 = vpop.permute.xlu0 %849
    %v852 = vadd.f32 %v842, %v850
    %v853 = vtanh.pop %v852
    %855 = vrot.lane.b32.xlu0 %v853, 64
    %v856 = vpop.permute.xlu0 %855
    %v858 = vmul.f32 %v838, %v856
    %s859 = sld [smem:[#allocation8 + $0x2]]
    %v860 = vstv %s859
    %v861 = vmul.f32 %v860, %v858
    %v863 = vrot.slane %v861, 2
    %v865 = vadd.f32 %v754, %v863
    %v867 = vrot.slane %v858, 2
    %868 = vrot.lane.b32.xlu0 %v867, 32
    %v869 = vpop.permute.xlu0 %868
    %v870 = vsel %vm545, %v869, 0
    %872 = vmatprep.subr.mxu0 0.0
    %873 = vmatpush1.msra.mxu0 %v534
    %874 = vmatprep.subr.mxu0 0.0
    %875 = vmatpush1.msra.mxu0 %v535
    %876 = vmatprep.subr.mxu0 0.0
    %877 = vmatpush1.msra.mxu0 %v536
    %878 = vmatprep.subr.mxu0 0.0
    %879 = vmatpush1.msra.mxu0 %v537
    %880 = vmatprep.subr.mxu0 0.0
    %881 = vmatpush1.msra.mxu0 0.0
    %882 = vmatprep.subr.mxu0 0.0
    %883 = vmatpush1.msra.mxu0 0.0
    %884 = vmatprep.subr.mxu0 0.0
    %885 = vmatpush1.msra.mxu0 0.0
    %886 = vmatprep.subr.mxu0 0.0
    %887 = vmatpush1.msra.mxu0 0.0
    %888 = vmatprep.subr.mxu0 0.0
    %889 = vmatpush1.msra.mxu0 0.0
    %890 = vmatprep.subr.mxu0 0.0
    %891 = vmatpush1.msra.mxu0 0.0
    %892 = vmatprep.subr.mxu0 0.0
    %893 = vmatpush1.msra.mxu0 0.0
    %894 = vmatprep.subr.mxu0 0.0
    %895 = vmatpush1.msra.mxu0 0.0
    %896 = vmatprep.subr.mxu0 0.0
    %897 = vmatpush1.msra.mxu0 0.0
    %898 = vmatprep.subr.mxu0 0.0
    %899 = vmatpush1.msra.mxu0 0.0
    %900 = vmatprep.subr.mxu0 0.0
    %901 = vmatpush1.msra.mxu0 0.0
    %902 = vmatprep.subr.mxu0 0.0
    %903 = vmatpush1.msra.mxu0 0.0
    %904 = vmatprep.subr.mxu0 0.0
    %905 = vmatpush1.msra.mxu0 0.0
    %906 = vmatprep.subr.mxu0 0.0
    %907 = vmatpush1.msra.mxu0 0.0
    %908 = vmatprep.subr.mxu0 0.0
    %909 = vmatpush1.msra.mxu0 0.0
    %910 = vmatprep.subr.mxu0 0.0
    %911 = vmatpush1.msra.mxu0 0.0
    %912 = vmatprep.subr.mxu0 0.0
    %913 = vmatpush1.msra.mxu0 0.0
    %914 = vmatprep.subr.mxu0 0.0
    %915 = vmatpush1.msra.mxu0 0.0
    %916 = vmatprep.subr.mxu0 0.0
    %917 = vmatpush1.msra.mxu0 0.0
    %918 = vmatprep.subr.mxu0 0.0
    %919 = vmatpush1.msra.mxu0 0.0
    %920 = vmatprep.subr.mxu0 0.0
    %921 = vmatpush1.msra.mxu0 0.0
    %922 = vmatprep.subr.mxu0 0.0
    %923 = vmatpush1.msra.mxu0 0.0
    %924 = vmatprep.subr.mxu0 0.0
    %925 = vmatpush1.msra.mxu0 0.0
    %926 = vmatprep.subr.mxu0 0.0
    %927 = vmatpush1.msra.mxu0 0.0
    %928 = vmatprep.subr.mxu0 0.0
    %929 = vmatpush1.msra.mxu0 0.0
    %930 = vmatprep.subr.mxu0 0.0
    %931 = vmatpush1.msra.mxu0 0.0
    %932 = vmatprep.subr.mxu0 0.0
    %933 = vmatpush1.msra.mxu0 0.0
    %934 = vmatprep.subr.mxu0 0.0
    %935 = vmatpush1.msra.mxu0 0.0
    %936 = vmatprep.mubr.f32.mxu0 0.0
    %937 = vmatmul.mubr.f32.gmra.mrb[0].mxu0 %v870
    %v938 = vpop.f32.mrb[0].mxu0
    %v939 = vadd.f32 0.0, %v938
    %v940 = vpop.f32.mrb[0].mxu0
    %941 = vdwg.mxu0
    %v943 = vrot.slane %v939, 5
    %v945 = vadd.f32 %v531, %v943
    %v946 = vmul.f32 %v945, %v543
    %v947 = vtanh.pop %v946
    %v948 = vmul.f32 %v947, %v543
    %v949 = vadd.f32 %v948, %v544
    %v951 = vrot.slane %v852, 7
    %v953 = vmul.f32 %v949, %v951
    %955 = vrot.lane.b32.xlu0 %v949, 64
    %v956 = vpop.permute.xlu0 %955
    %v958 = vmul.f32 %v949, %v956
    %960 = vrot.lane.b32.xlu0 %v958, 32
    %v961 = vpop.permute.xlu0 %960
    %v963 = vadd.f32 %v953, %v961
    %v964 = vtanh.pop %v963
    %966 = vrot.lane.b32.xlu0 %v964, 64
    %v967 = vpop.permute.xlu0 %966
    %v969 = vmul.f32 %v949, %v967
    %s970 = sld [smem:[#allocation8 + $0x3]]
    %v971 = vstv %s970
    %v972 = vmul.f32 %v971, %v969
    %v974 = vrot.slane %v972, 3
    %v976 = vadd.f32 %v865, %v974
    %v978 = vrot.slane %v969, 3
    %979 = vrot.lane.b32.xlu0 %v978, 32
    %v980 = vpop.permute.xlu0 %979
    %v981 = vsel %vm545, %v980, 0
    %983 = vmatprep.subr.mxu0 0.0
    %984 = vmatpush1.msra.mxu0 %v534
    %985 = vmatprep.subr.mxu0 0.0
    %986 = vmatpush1.msra.mxu0 %v535
    %987 = vmatprep.subr.mxu0 0.0
    %988 = vmatpush1.msra.mxu0 %v536
    %989 = vmatprep.subr.mxu0 0.0
    %990 = vmatpush1.msra.mxu0 %v537
    %991 = vmatprep.subr.mxu0 0.0
    %992 = vmatpush1.msra.mxu0 0.0
    %993 = vmatprep.subr.mxu0 0.0
    %994 = vmatpush1.msra.mxu0 0.0
    %995 = vmatprep.subr.mxu0 0.0
    %996 = vmatpush1.msra.mxu0 0.0
    %997 = vmatprep.subr.mxu0 0.0
    %998 = vmatpush1.msra.mxu0 0.0
    %999 = vmatprep.subr.mxu0 0.0
    %1000 = vmatpush1.msra.mxu0 0.0
    %1001 = vmatprep.subr.mxu0 0.0
    %1002 = vmatpush1.msra.mxu0 0.0
    %1003 = vmatprep.subr.mxu0 0.0
    %1004 = vmatpush1.msra.mxu0 0.0
    %1005 = vmatprep.subr.mxu0 0.0
    %1006 = vmatpush1.msra.mxu0 0.0
    %1007 = vmatprep.subr.mxu0 0.0
    %1008 = vmatpush1.msra.mxu0 0.0
    %1009 = vmatprep.subr.mxu0 0.0
    %1010 = vmatpush1.msra.mxu0 0.0
    %1011 = vmatprep.subr.mxu0 0.0
    %1012 = vmatpush1.msra.mxu0 0.0
    %1013 = vmatprep.subr.mxu0 0.0
    %1014 = vmatpush1.msra.mxu0 0.0
    %1015 = vmatprep.subr.mxu0 0.0
    %1016 = vmatpush1.msra.mxu0 0.0
    %1017 = vmatprep.subr.mxu0 0.0
    %1018 = vmatpush1.msra.mxu0 0.0
    %1019 = vmatprep.subr.mxu0 0.0
    %1020 = vmatpush1.msra.mxu0 0.0
    %1021 = vmatprep.subr.mxu0 0.0
    %1022 = vmatpush1.msra.mxu0 0.0
    %1023 = vmatprep.subr.mxu0 0.0
    %1024 = vmatpush1.msra.mxu0 0.0
    %1025 = vmatprep.subr.mxu0 0.0
    %1026 = vmatpush1.msra.mxu0 0.0
    %1027 = vmatprep.subr.mxu0 0.0
    %1028 = vmatpush1.msra.mxu0 0.0
    %1029 = vmatprep.subr.mxu0 0.0
    %1030 = vmatpush1.msra.mxu0 0.0
    %1031 = vmatprep.subr.mxu0 0.0
    %1032 = vmatpush1.msra.mxu0 0.0
    %1033 = vmatprep.subr.mxu0 0.0
    %1034 = vmatpush1.msra.mxu0 0.0
    %1035 = vmatprep.subr.mxu0 0.0
    %1036 = vmatpush1.msra.mxu0 0.0
    %1037 = vmatprep.subr.mxu0 0.0
    %1038 = vmatpush1.msra.mxu0 0.0
    %1039 = vmatprep.subr.mxu0 0.0
    %1040 = vmatpush1.msra.mxu0 0.0
    %1041 = vmatprep.subr.mxu0 0.0
    %1042 = vmatpush1.msra.mxu0 0.0
    %1043 = vmatprep.subr.mxu0 0.0
    %1044 = vmatpush1.msra.mxu0 0.0
    %1045 = vmatprep.subr.mxu0 0.0
    %1046 = vmatpush1.msra.mxu0 0.0
    %1047 = vmatprep.mubr.f32.mxu0 0.0
    %1048 = vmatmul.mubr.f32.gmra.mrb[0].mxu0 %v981
    %v1049 = vpop.f32.mrb[0].mxu0
    %v1050 = vadd.f32 0.0, %v1049
    %v1051 = vpop.f32.mrb[0].mxu0
    %1052 = vdwg.mxu0
    %v1054 = vrot.slane %v1050, 4
    %v1056 = vadd.f32 %v531, %v1054
    %v1057 = vmul.f32 %v1056, %v543
    %v1058 = vtanh.pop %v1057
    %v1059 = vmul.f32 %v1058, %v543
    %v1060 = vadd.f32 %v1059, %v544
    %v1062 = vrot.slane %v963, 7
    %v1064 = vmul.f32 %v1060, %v1062
    %1066 = vrot.lane.b32.xlu0 %v1060, 64
    %v1067 = vpop.permute.xlu0 %1066
    %v1069 = vmul.f32 %v1060, %v1067
    %1071 = vrot.lane.b32.xlu0 %v1069, 32
    %v1072 = vpop.permute.xlu0 %1071
    %v1074 = vadd.f32 %v1064, %v1072
    %v1075 = vtanh.pop %v1074
    %1077 = vrot.lane.b32.xlu0 %v1075, 64
    %v1078 = vpop.permute.xlu0 %1077
    %v1080 = vmul.f32 %v1060, %v1078
    %s1081 = sld [smem:[#allocation8 + $0x4]]
    %v1082 = vstv %s1081
    %v1083 = vmul.f32 %v1082, %v1080
    %v1085 = vrot.slane %v1083, 4
    %v1087 = vadd.f32 %v976, %v1085
    %v1089 = vrot.slane %v1080, 4
    %1090 = vrot.lane.b32.xlu0 %v1089, 32
    %v1091 = vpop.permute.xlu0 %1090
    %v1092 = vsel %vm545, %v1091, 0
    %1094 = vmatprep.subr.mxu0 0.0
    %1095 = vmatpush1.msra.mxu0 %v534
    %1096 = vmatprep.subr.mxu0 0.0
    %1097 = vmatpush1.msra.mxu0 %v535
    %1098 = vmatprep.subr.mxu0 0.0
    %1099 = vmatpush1.msra.mxu0 %v536
    %1100 = vmatprep.subr.mxu0 0.0
    %1101 = vmatpush1.msra.mxu0 %v537
    %1102 = vmatprep.subr.mxu0 0.0
    %1103 = vmatpush1.msra.mxu0 0.0
    %1104 = vmatprep.subr.mxu0 0.0
    %1105 = vmatpush1.msra.mxu0 0.0
    %1106 = vmatprep.subr.mxu0 0.0
    %1107 = vmatpush1.msra.mxu0 0.0
    %1108 = vmatprep.subr.mxu0 0.0
    %1109 = vmatpush1.msra.mxu0 0.0
    %1110 = vmatprep.subr.mxu0 0.0
    %1111 = vmatpush1.msra.mxu0 0.0
    %1112 = vmatprep.subr.mxu0 0.0
    %1113 = vmatpush1.msra.mxu0 0.0
    %1114 = vmatprep.subr.mxu0 0.0
    %1115 = vmatpush1.msra.mxu0 0.0
    %1116 = vmatprep.subr.mxu0 0.0
    %1117 = vmatpush1.msra.mxu0 0.0
    %1118 = vmatprep.subr.mxu0 0.0
    %1119 = vmatpush1.msra.mxu0 0.0
    %1120 = vmatprep.subr.mxu0 0.0
    %1121 = vmatpush1.msra.mxu0 0.0
    %1122 = vmatprep.subr.mxu0 0.0
    %1123 = vmatpush1.msra.mxu0 0.0
    %1124 = vmatprep.subr.mxu0 0.0
    %1125 = vmatpush1.msra.mxu0 0.0
    %1126 = vmatprep.subr.mxu0 0.0
    %1127 = vmatpush1.msra.mxu0 0.0
    %1128 = vmatprep.subr.mxu0 0.0
    %1129 = vmatpush1.msra.mxu0 0.0
    %1130 = vmatprep.subr.mxu0 0.0
    %1131 = vmatpush1.msra.mxu0 0.0
    %1132 = vmatprep.subr.mxu0 0.0
    %1133 = vmatpush1.msra.mxu0 0.0
    %1134 = vmatprep.subr.mxu0 0.0
    %1135 = vmatpush1.msra.mxu0 0.0
    %1136 = vmatprep.subr.mxu0 0.0
    %1137 = vmatpush1.msra.mxu0 0.0
    %1138 = vmatprep.subr.mxu0 0.0
    %1139 = vmatpush1.msra.mxu0 0.0
    %1140 = vmatprep.subr.mxu0 0.0
    %1141 = vmatpush1.msra.mxu0 0.0
    %1142 = vmatprep.subr.mxu0 0.0
    %1143 = vmatpush1.msra.mxu0 0.0
    %1144 = vmatprep.subr.mxu0 0.0
    %1145 = vmatpush1.msra.mxu0 0.0
    %1146 = vmatprep.subr.mxu0 0.0
    %1147 = vmatpush1.msra.mxu0 0.0
    %1148 = vmatprep.subr.mxu0 0.0
    %1149 = vmatpush1.msra.mxu0 0.0
    %1150 = vmatprep.subr.mxu0 0.0
    %1151 = vmatpush1.msra.mxu0 0.0
    %1152 = vmatprep.subr.mxu0 0.0
    %1153 = vmatpush1.msra.mxu0 0.0
    %1154 = vmatprep.subr.mxu0 0.0
    %1155 = vmatpush1.msra.mxu0 0.0
    %1156 = vmatprep.subr.mxu0 0.0
    %1157 = vmatpush1.msra.mxu0 0.0
    %1158 = vmatprep.mubr.f32.mxu0 0.0
    %1159 = vmatmul.mubr.f32.gmra.mrb[0].mxu0 %v1092
    %v1160 = vpop.f32.mrb[0].mxu0
    %v1161 = vadd.f32 0.0, %v1160
    %v1162 = vpop.f32.mrb[0].mxu0
    %1163 = vdwg.mxu0
    %v1165 = vrot.slane %v1161, 3
    %v1167 = vadd.f32 %v531, %v1165
    %v1168 = vmul.f32 %v1167, %v543
    %v1169 = vtanh.pop %v1168
    %v1170 = vmul.f32 %v1169, %v543
    %v1171 = vadd.f32 %v1170, %v544
    %v1173 = vrot.slane %v1074, 7
    %v1175 = vmul.f32 %v1171, %v1173
    %1177 = vrot.lane.b32.xlu0 %v1171, 64
    %v1178 = vpop.permute.xlu0 %1177
    %v1180 = vmul.f32 %v1171, %v1178
    %1182 = vrot.lane.b32.xlu0 %v1180, 32
    %v1183 = vpop.permute.xlu0 %1182
    %v1185 = vadd.f32 %v1175, %v1183
    %v1186 = vtanh.pop %v1185
    %1188 = vrot.lane.b32.xlu0 %v1186, 64
    %v1189 = vpop.permute.xlu0 %1188
    %v1191 = vmul.f32 %v1171, %v1189
    %s1192 = sld [smem:[#allocation8 + $0x5]]
    %v1193 = vstv %s1192
    %v1194 = vmul.f32 %v1193, %v1191
    %v1196 = vrot.slane %v1194, 5
    %v1198 = vadd.f32 %v1087, %v1196
    %v1200 = vrot.slane %v1191, 5
    %1201 = vrot.lane.b32.xlu0 %v1200, 32
    %v1202 = vpop.permute.xlu0 %1201
    %v1203 = vsel %vm545, %v1202, 0
    %1205 = vmatprep.subr.mxu0 0.0
    %1206 = vmatpush1.msra.mxu0 %v534
    %1207 = vmatprep.subr.mxu0 0.0
    %1208 = vmatpush1.msra.mxu0 %v535
    %1209 = vmatprep.subr.mxu0 0.0
    %1210 = vmatpush1.msra.mxu0 %v536
    %1211 = vmatprep.subr.mxu0 0.0
    %1212 = vmatpush1.msra.mxu0 %v537
    %1213 = vmatprep.subr.mxu0 0.0
    %1214 = vmatpush1.msra.mxu0 0.0
    %1215 = vmatprep.subr.mxu0 0.0
    %1216 = vmatpush1.msra.mxu0 0.0
    %1217 = vmatprep.subr.mxu0 0.0
    %1218 = vmatpush1.msra.mxu0 0.0
    %1219 = vmatprep.subr.mxu0 0.0
    %1220 = vmatpush1.msra.mxu0 0.0
    %1221 = vmatprep.subr.mxu0 0.0
    %1222 = vmatpush1.msra.mxu0 0.0
    %1223 = vmatprep.subr.mxu0 0.0
    %1224 = vmatpush1.msra.mxu0 0.0
    %1225 = vmatprep.subr.mxu0 0.0
    %1226 = vmatpush1.msra.mxu0 0.0
    %1227 = vmatprep.subr.mxu0 0.0
    %1228 = vmatpush1.msra.mxu0 0.0
    %1229 = vmatprep.subr.mxu0 0.0
    %1230 = vmatpush1.msra.mxu0 0.0
    %1231 = vmatprep.subr.mxu0 0.0
    %1232 = vmatpush1.msra.mxu0 0.0
    %1233 = vmatprep.subr.mxu0 0.0
    %1234 = vmatpush1.msra.mxu0 0.0
    %1235 = vmatprep.subr.mxu0 0.0
    %1236 = vmatpush1.msra.mxu0 0.0
    %1237 = vmatprep.subr.mxu0 0.0
    %1238 = vmatpush1.msra.mxu0 0.0
    %1239 = vmatprep.subr.mxu0 0.0
    %1240 = vmatpush1.msra.mxu0 0.0
    %1241 = vmatprep.subr.mxu0 0.0
    %1242 = vmatpush1.msra.mxu0 0.0
    %1243 = vmatprep.subr.mxu0 0.0
    %1244 = vmatpush1.msra.mxu0 0.0
    %1245 = vmatprep.subr.mxu0 0.0
    %1246 = vmatpush1.msra.mxu0 0.0
    %1247 = vmatprep.subr.mxu0 0.0
    %1248 = vmatpush1.msra.mxu0 0.0
    %1249 = vmatprep.subr.mxu0 0.0
    %1250 = vmatpush1.msra.mxu0 0.0
    %1251 = vmatprep.subr.mxu0 0.0
    %1252 = vmatpush1.msra.mxu0 0.0
    %1253 = vmatprep.subr.mxu0 0.0
    %1254 = vmatpush1.msra.mxu0 0.0
    %1255 = vmatprep.subr.mxu0 0.0
    %1256 = vmatpush1.msra.mxu0 0.0
    %1257 = vmatprep.subr.mxu0 0.0
    %1258 = vmatpush1.msra.mxu0 0.0
    %1259 = vmatprep.subr.mxu0 0.0
    %1260 = vmatpush1.msra.mxu0 0.0
    %1261 = vmatprep.subr.mxu0 0.0
    %1262 = vmatpush1.msra.mxu0 0.0
    %1263 = vmatprep.subr.mxu0 0.0
    %1264 = vmatpush1.msra.mxu0 0.0
    %1265 = vmatprep.subr.mxu0 0.0
    %1266 = vmatpush1.msra.mxu0 0.0
    %1267 = vmatprep.subr.mxu0 0.0
    %1268 = vmatpush1.msra.mxu0 0.0
    %1269 = vmatprep.mubr.f32.mxu0 0.0
    %1270 = vmatmul.mubr.f32.gmra.mrb[0].mxu0 %v1203
    %v1271 = vpop.f32.mrb[0].mxu0
    %v1272 = vadd.f32 0.0, %v1271
    %v1273 = vpop.f32.mrb[0].mxu0
    %1274 = vdwg.mxu0
    %v1276 = vrot.slane %v1272, 2
    %v1278 = vadd.f32 %v531, %v1276
    %v1279 = vmul.f32 %v1278, %v543
    %v1280 = vtanh.pop %v1279
    %v1281 = vmul.f32 %v1280, %v543
    %v1282 = vadd.f32 %v1281, %v544
    %v1284 = vrot.slane %v1185, 7
    %v1286 = vmul.f32 %v1282, %v1284
    %1288 = vrot.lane.b32.xlu0 %v1282, 64
    %v1289 = vpop.permute.xlu0 %1288
    %v1291 = vmul.f32 %v1282, %v1289
    %1293 = vrot.lane.b32.xlu0 %v1291, 32
    %v1294 = vpop.permute.xlu0 %1293
    %v1296 = vadd.f32 %v1286, %v1294
    %v1297 = vtanh.pop %v1296
    %1299 = vrot.lane.b32.xlu0 %v1297, 64
    %v1300 = vpop.permute.xlu0 %1299
    %v1302 = vmul.f32 %v1282, %v1300
    %s1303 = sld [smem:[#allocation8 + $0x6]]
    %v1304 = vstv %s1303
    %v1305 = vmul.f32 %v1304, %v1302
    %v1307 = vrot.slane %v1305, 6
    %v1309 = vadd.f32 %v1198, %v1307
    %v1311 = vrot.slane %v1302, 6
    %1312 = vrot.lane.b32.xlu0 %v1311, 32
    %v1313 = vpop.permute.xlu0 %1312
    %v1314 = vsel %vm545, %v1313, 0
    %1316 = vmatprep.subr.mxu0 0.0
    %1317 = vmatpush1.msra.mxu0 %v534
    %1318 = vmatprep.subr.mxu0 0.0
    %1319 = vmatpush1.msra.mxu0 %v535
    %1320 = vmatprep.subr.mxu0 0.0
    %1321 = vmatpush1.msra.mxu0 %v536
    %1322 = vmatprep.subr.mxu0 0.0
    %1323 = vmatpush1.msra.mxu0 %v537
    %1324 = vmatprep.subr.mxu0 0.0
    %1325 = vmatpush1.msra.mxu0 0.0
    %1326 = vmatprep.subr.mxu0 0.0
    %1327 = vmatpush1.msra.mxu0 0.0
    %1328 = vmatprep.subr.mxu0 0.0
    %1329 = vmatpush1.msra.mxu0 0.0
    %1330 = vmatprep.subr.mxu0 0.0
    %1331 = vmatpush1.msra.mxu0 0.0
    %1332 = vmatprep.subr.mxu0 0.0
    %1333 = vmatpush1.msra.mxu0 0.0
    %1334 = vmatprep.subr.mxu0 0.0
    %1335 = vmatpush1.msra.mxu0 0.0
    %1336 = vmatprep.subr.mxu0 0.0
    %1337 = vmatpush1.msra.mxu0 0.0
    %1338 = vmatprep.subr.mxu0 0.0
    %1339 = vmatpush1.msra.mxu0 0.0
    %1340 = vmatprep.subr.mxu0 0.0
    %1341 = vmatpush1.msra.mxu0 0.0
    %1342 = vmatprep.subr.mxu0 0.0
    %1343 = vmatpush1.msra.mxu0 0.0
    %1344 = vmatprep.subr.mxu0 0.0
    %1345 = vmatpush1.msra.mxu0 0.0
    %1346 = vmatprep.subr.mxu0 0.0
    %1347 = vmatpush1.msra.mxu0 0.0
    %1348 = vmatprep.subr.mxu0 0.0
    %1349 = vmatpush1.msra.mxu0 0.0
    %1350 = vmatprep.subr.mxu0 0.0
    %1351 = vmatpush1.msra.mxu0 0.0
    %1352 = vmatprep.subr.mxu0 0.0
    %1353 = vmatpush1.msra.mxu0 0.0
    %1354 = vmatprep.subr.mxu0 0.0
    %1355 = vmatpush1.msra.mxu0 0.0
    %1356 = vmatprep.subr.mxu0 0.0
    %1357 = vmatpush1.msra.mxu0 0.0
    %1358 = vmatprep.subr.mxu0 0.0
    %1359 = vmatpush1.msra.mxu0 0.0
    %1360 = vmatprep.subr.mxu0 0.0
    %1361 = vmatpush1.msra.mxu0 0.0
    %1362 = vmatprep.subr.mxu0 0.0
    %1363 = vmatpush1.msra.mxu0 0.0
    %1364 = vmatprep.subr.mxu0 0.0
    %1365 = vmatpush1.msra.mxu0 0.0
    %1366 = vmatprep.subr.mxu0 0.0
    %1367 = vmatpush1.msra.mxu0 0.0
    %1368 = vmatprep.subr.mxu0 0.0
    %1369 = vmatpush1.msra.mxu0 0.0
    %1370 = vmatprep.subr.mxu0 0.0
    %1371 = vmatpush1.msra.mxu0 0.0
    %1372 = vmatprep.subr.mxu0 0.0
    %1373 = vmatpush1.msra.mxu0 0.0
    %1374 = vmatprep.subr.mxu0 0.0
    %1375 = vmatpush1.msra.mxu0 0.0
    %1376 = vmatprep.subr.mxu0 0.0
    %1377 = vmatpush1.msra.mxu0 0.0
    %1378 = vmatprep.subr.mxu0 0.0
    %1379 = vmatpush1.msra.mxu0 0.0
    %1380 = vmatprep.mubr.f32.mxu0 0.0
    %1381 = vmatmul.mubr.f32.gmra.mrb[0].mxu0 %v1314
    %v1382 = vpop.f32.mrb[0].mxu0
    %v1383 = vadd.f32 0.0, %v1382
    %v1384 = vpop.f32.mrb[0].mxu0
    %1385 = vdwg.mxu0
    %v1387 = vrot.slane %v1383, 1
    %v1389 = vadd.f32 %v531, %v1387
    %v1390 = vmul.f32 %v1389, %v543
    %v1391 = vtanh.pop %v1390
    %v1392 = vmul.f32 %v1391, %v543
    %v1393 = vadd.f32 %v1392, %v544
    %v1395 = vrot.slane %v1296, 7
    %v1397 = vmul.f32 %v1393, %v1395
    %1399 = vrot.lane.b32.xlu0 %v1393, 64
    %v1400 = vpop.permute.xlu0 %1399
    %v1402 = vmul.f32 %v1393, %v1400
    %1404 = vrot.lane.b32.xlu0 %v1402, 32
    %v1405 = vpop.permute.xlu0 %1404
    %v1407 = vadd.f32 %v1397, %v1405
    %v1408 = vtanh.pop %v1407
    %1410 = vrot.lane.b32.xlu0 %v1408, 64
    %v1411 = vpop.permute.xlu0 %1410
    %v1413 = vmul.f32 %v1393, %v1411
    %s1414 = sld [smem:[#allocation8 + $0x7]]
    %v1415 = vstv %s1414
    %v1416 = vmul.f32 %v1415, %v1413
    %v1418 = vrot.slane %v1416, 7
    %v1420 = vadd.f32 %v1309, %v1418
    %1422 = vrot.lane.b32.xlu0 %v1420, 32
    %v1423 = vpop.permute.xlu0 %1422
    %vm1425 = vcmask 253952
    %v1426 = vsel %vm1425, %v1423, 0.0
    %1427 = vadd.xlane.f32.xlu0 %v1426
    %v1428 = vpop.xlane.xlu0 %1427
    %v1429 = vrot.slane %v1428, 4
    %v1430 = vadd.f32 %v1428, %v1429
    %v1431 = vrot.slane %v1430, 2
    %v1432 = vadd.f32 %v1430, %v1431
    %v1433 = vrot.slane %v1432, 1
    %v1434 = vadd.f32 %v1432, %v1433
    %s1435 = vtos %v1434
    %s1436 = smul.f32 %s1435, 0.03125
    %s1437 = sld [smem:[#allocation4]]
    %s1438 = sadd.f32 %s1436, %s1437
    %v1439 = vstv %s1438
    %1440 = vst [vmem:[#allocation10] sm:$0x1] %v1439
    // Predicated region
    $region274: #{tpu_custom_call.1} parent=1 // pred_check
      _
    $region275: #{tpu_custom_call.1} parent=1 // pred_check_branch
      %1442 = sbr.rel (0) target = $region277
    $region276: #{tpu_custom_call.1} parent=1 // pred_region
      %s1444 = ssub.s32 16, 16
      %1445 = vsyncadd [#allocation6], %s1444
      %s1447 = sshll.u32 [#allocation10], 4
      %s1448 = int_to_ptr.vmem [resolvable:$true] %s1447
      %1450 = dma.vmem_to_hbm [thread:$0]  %s1448, 16, %s7, [#allocation6]
    $region277: #{tpu_custom_call.1} parent=1 // pred_fallthru
      _
    // Predicated region
    $region278: #{tpu_custom_call.1} parent=1 // pred_check
      _
    $region279: #{tpu_custom_call.1} parent=1 // pred_check_branch
      %1452 = sbr.rel (0) target = $region281
    $region280: #{tpu_custom_call.1} parent=1 // pred_region
      %1453 = dma.done [#allocation6], 16
    $region281: #{tpu_custom_call.1} parent=1 // pred_fallthru
      _
    %1454 = vsyncpa [#allocation6], 1
    %1455 = vsyncpa [#allocation7], 1
    %1456 = vsyncpa [#allocation9], 1
  %1457 = vsyncmov [#allocation3]
  %s1458 = vpop.sfrf %1457
  %p1459 = scmp.eq.s32.totalorder %s1458, 0
  %p1460 = pneg %p1459
  %1462 = shalt.err (%p1460)
  %s1463 = scalar_lea.sflag [#allocation3], 1
  %1464 = vsyncmov %s1463
  %s1465 = vpop.sfrf %1464
  %p1466 = scmp.eq.s32.totalorder %s1465, 0
  %p1467 = pneg %p1466
  %1469 = shalt.err (%p1467)
  %s1470 = scalar_lea.sflag [#allocation3], 2
  %1471 = vsyncmov %s1470
  %s1472 = vpop.sfrf %1471
  %p1473 = scmp.eq.s32.totalorder %s1472, 0
  %p1474 = pneg %p1473
  %1476 = shalt.err (%p1474)
  %s1477 = scalar_lea.sflag [#allocation3], 3
  %1478 = vsyncmov %s1477
  %s1479 = vpop.sfrf %1478
  %p1480 = scmp.eq.s32.totalorder %s1479, 0
  %p1481 = pneg %p1480
  %1483 = shalt.err (%p1481)
  %s1484 = scalar_lea.sflag [#allocation3], 4
  %1485 = vsyncmov %s1484
  %s1486 = vpop.sfrf %1485
  %p1487 = scmp.eq.s32.totalorder %s1486, 0
  %p1488 = pneg %p1487
  %1490 = shalt.err (%p1488)
  %s1491 = scalar_lea.sflag [#allocation3], 5
  %1492 = vsyncmov %s1491
  %s1493 = vpop.sfrf %1492
  %p1494 = scmp.eq.s32.totalorder %s1493, 0
  %p1495 = pneg %p1494
  %1497 = shalt.err (%p1495)
  %s1498 = scalar_lea.sflag [#allocation3], 6
  %1499 = vsyncmov %s1498
  %s1500 = vpop.sfrf %1499
  %p1501 = scmp.eq.s32.totalorder %s1500, 0
  %p1502 = pneg %p1501
  %1504 = shalt.err (%p1502)
  %s1505 = scalar_lea.sflag [#allocation3], 7
  %1506 = vsyncmov %s1505
  %s1507 = vpop.sfrf %1506
  %p1508 = scmp.eq.s32.totalorder %s1507, 0
  %p1509 = pneg %p1508
  %1511 = shalt.err (%p1509)

</llo_original>
